<compile_context>
chip_gen: v5e
topology: v5e:2x2
jax: 0.10.0
libtpu: 0.0.40
codegen_flags: <defaults>
</compile_context>

<pallas_src>
import math
import functools

import jax
import jax.numpy as jnp
import numpy as np
from jax import lax
from jax.experimental import pallas as pl
from jax.experimental.pallas import tpu as pltpu


def _mha_kernel(xq_ref, xk_ref, xv_ref,
                wq_ref, bq_ref,
                wk_ref, bk_ref,
                wv_ref, bv_ref,
                out_ref,
                k_scratch, v_scratch,
                *, h, d_k, kv_tile):
    """One (batch, q-tile) grid step.

    K/V projections are computed once per batch (q-tile index 0) into persistent
    VMEM scratch; attention over the sequence is done with flash-style online
    softmax over KV tiles of size `kv_tile`; the output projection reuses
    linears[1] (wk/bk), as in the reference module."""
    compute_dtype = xq_ref.dtype
    tq = xq_ref.shape[1]
    s_kv = xk_ref.shape[1]
    num_kv = s_kv // kv_tile

    # nn.Linear: y = x @ W.T + b. Contract x's last dim against W's last dim
    # (NT matmul) so no transposed copy of W is ever materialized.
    def proj(x, w_ref, b_ref):
        y = lax.dot_general(x, w_ref[...], (((1,), (1,)), ((), ())),
                            preferred_element_type=jnp.float32)
        return y + b_ref[...]                       # (rows, D) f32

    # --- K/V projection hoist: once per batch (q-tile axis is "arbitrary"). ---
    @pl.when(pl.program_id(1) == 0)
    def _():
        k_scratch[...] = proj(xk_ref[0], wk_ref, bk_ref).astype(compute_dtype)
        v_scratch[...] = proj(xv_ref[0], wv_ref, bv_ref).astype(compute_dtype)

    # --- Q projection for this tile (scaled by 1/sqrt(d_k) up front). ---
    scale = 1.0 / math.sqrt(float(d_k))
    q = (proj(xq_ref[0], wq_ref, bq_ref) * scale).astype(compute_dtype)  # (TQ, D)
    q_h = jnp.swapaxes(q.reshape(tq, h, d_k), 0, 1)                      # (h, TQ, d_k)

    # --- Flash-style online softmax over KV tiles (no (h, TQ, S) tensor). ---
    def kv_step(j, carry):
        m_prev, l_prev, acc_prev = carry
        off = pl.multiple_of(j * kv_tile, kv_tile)
        k_blk = k_scratch[pl.ds(off, kv_tile), :]                        # (TK, D)
        v_blk = v_scratch[pl.ds(off, kv_tile), :]                        # (TK, D)
        k_h = jnp.swapaxes(k_blk.reshape(kv_tile, h, d_k), 0, 1)         # (h, TK, d_k)
        v_h = jnp.swapaxes(v_blk.reshape(kv_tile, h, d_k), 0, 1)         # (h, TK, d_k)

        s_blk = jnp.einsum("hqd,hkd->hqk", q_h, k_h,
                           preferred_element_type=jnp.float32)           # (h, TQ, TK) f32
        m_new = jnp.maximum(m_prev, jnp.max(s_blk, axis=-1, keepdims=True))
        alpha = jnp.exp(m_prev - m_new)
        p = jnp.exp(s_blk - m_new)                                       # f32 softmax math
        # TODO(synk): no mask path (mask=None in the reference call).
        # TODO(synk): training-mode dropout on p_attn not implemented.
        l_new = alpha * l_prev + jnp.sum(p, axis=-1, keepdims=True)
        pv = jnp.einsum("hqk,hkd->hqd", p.astype(compute_dtype), v_h,
                        preferred_element_type=jnp.float32)              # (h, TQ, d_k)
        acc_new = alpha * acc_prev + pv
        return m_new, l_new, acc_new

    m0 = jnp.full((h, tq, 1), -jnp.inf, jnp.float32)
    l0 = jnp.zeros((h, tq, 1), jnp.float32)
    acc0 = jnp.zeros((h, tq, d_k), jnp.float32)
    if num_kv == 1:
        m_f, l_f, acc_f = kv_step(0, (m0, l0, acc0))
    else:
        m_f, l_f, acc_f = lax.fori_loop(0, num_kv, kv_step, (m0, l0, acc0))

    # Exact normalization (the approx=True reciprocal failed the accuracy check).
    attn = (acc_f / l_f).astype(compute_dtype)                           # (h, TQ, d_k)
    concat = jnp.swapaxes(attn, 0, 1).reshape(tq, h * d_k)               # (TQ, D) slab

    # Final projection: the reference module applies self.linears[1] (the key
    # projection) as the output projection -- reuse wk/bk, no duplicate operand.
    y = lax.dot_general(concat, wk_ref[...], (((1,), (1,)), ((), ())),
                        preferred_element_type=jnp.float32) + bk_ref[...]
    out_ref[0] = y.astype(out_ref.dtype)


def _pick_tiles(s_q, s_kv, d, h, itemsize, q_tile=None, kv_tile=None):
    """Generation/VMEM-aware (q_tile, kv_tile): prefer the largest MXU-friendly
    q-tile (>=256 fills the 256-wide MXU M dim on v6e/v7x), then the largest
    kv-tile whose per-step footprint fits the chip's VMEM (64 MiB on v7x vs
    128 MiB on v5e/v6e)."""
    try:
        vmem_cap = int(pltpu.get_tpu_info().vmem_capacity_bytes)
    except Exception:
        vmem_cap = 64 * 1024 * 1024            # assume the smallest (v7x) part
    budget = int(vmem_cap * 0.55)              # headroom for pipeline bufs/spills

    def cands(forced, s, prefs):
        if forced is not None:
            return [forced]
        c = [p for p in prefs if p < s and s % p == 0]
        if s <= max(prefs):
            return [s] + c
        return c or [s]

    q_cands = cands(q_tile, s_q, (256, 128))
    k_cands = cands(kv_tile, s_kv, (1024, 512, 256, 128))

    d_k = d // h

    def footprint(tq, tk):
        fixed = 2 * s_kv * d * itemsize                  # persistent K/V scratch
        fixed += 2 * s_kv * d * itemsize                 # K/V inputs (single-buffered)
        fixed += 3 * d * d * itemsize + 3 * d * 4        # weights + f32 biases
        act = 2 * 2 * tq * d * itemsize                  # Q in + out (double-buffered)
        tmp = 2 * h * tq * tk * 4                        # scores + probs (f32)
        tmp += h * tq * (d_k + 2) * 4                    # online-softmax acc/m/l
        tmp += (tq + 2 * tk) * d * itemsize              # head-relayout temporaries
        return fixed + act + tmp

    for tq in sorted(q_cands, reverse=True):
        for tk in sorted(k_cands, reverse=True):
            if footprint(tq, tk) <= budget:
                return tq, tk
    return min(q_cands), min(k_cands)


def _vmem_limit_bytes():
    """~75% of physical VMEM, capped at 100 MiB -- well above the default
    scoped limit but leaving headroom on every generation."""
    try:
        cap = int(pltpu.get_tpu_info().vmem_capacity_bytes)
    except Exception:
        cap = 64 * 1024 * 1024
    return int(min(cap * 3 // 4, 100 * 1024 * 1024))


def multi_headed_attention(xq, xk, xv, params, *, h, q_tile=None, kv_tile=None):
    """params: dict with w0..w3, b0..b3 (4 Linear(d_model, d_model) layers).
    Only w0/b0 (Q), w1/b1 (K and, per the reference forward, the output
    projection) and w2/b2 (V) are consumed."""
    B, S_q, D = xq.shape
    S_kv = xk.shape[1]
    assert xv.shape[1] == S_kv and xk.shape[-1] == D and xv.shape[-1] == D
    assert D % h == 0
    d_k = D // h

    compute_dtype = xq.dtype
    itemsize = jnp.dtype(compute_dtype).itemsize
    tq, tk = _pick_tiles(S_q, S_kv, D, h, itemsize, q_tile=q_tile, kv_tile=kv_tile)
    assert S_q % tq == 0 and S_kv % tk == 0

    # Weights in the activation compute dtype (bf16 callers hit the fast MXU
    # path); biases stay f32 (they add into the f32 accumulator).
    wq = params["w0"].astype(compute_dtype)
    wk = params["w1"].astype(compute_dtype)   # K projection AND output projection (sic)
    wv = params["w2"].astype(compute_dtype)
    bq2 = params["b0"].astype(jnp.float32).reshape(1, D)
    bk2 = params["b1"].astype(jnp.float32).reshape(1, D)
    bv2 = params["b2"].astype(jnp.float32).reshape(1, D)

    xk = xk.astype(compute_dtype)
    xv = xv.astype(compute_dtype)

    # Q / output tiled over (batch, q-tile).
    q_spec = pl.BlockSpec((1, tq, D), lambda b, i: (b, i, 0))
    # K/V activations only change at batch boundaries -> single-buffer them.
    kv_spec = pl.BlockSpec((1, S_kv, D), lambda b, i: (b, 0, 0),
                           pipeline_mode=pl.Buffered(1))
    # Grid-invariant weights/biases: single-buffered.
    w_spec = pl.BlockSpec((D, D), lambda b, i: (0, 0),
                          pipeline_mode=pl.Buffered(1))
    b_spec = pl.BlockSpec((1, D), lambda b, i: (0, 0),
                          pipeline_mode=pl.Buffered(1))

    kernel = functools.partial(_mha_kernel, h=h, d_k=d_k, kv_tile=tk)

    return pl.pallas_call(
        kernel,
        out_shape=jax.ShapeDtypeStruct((B, S_q, D), xq.dtype),
        grid_spec=pltpu.PrefetchScalarGridSpec(
            num_scalar_prefetch=0,
            grid=(B, S_q // tq),
            in_specs=[q_spec, kv_spec, kv_spec,
                      w_spec, b_spec,
                      w_spec, b_spec,
                      w_spec, b_spec],
            out_specs=q_spec,
            scratch_shapes=[pltpu.VMEM((S_kv, D), compute_dtype),   # projected K
                            pltpu.VMEM((S_kv, D), compute_dtype)],  # projected V
        ),
        compiler_params=pltpu.CompilerParams(
            # q-tile axis must be sequential ("arbitrary") so the per-batch
            # K/V-projection hoist (pl.when(i == 0)) sees i=0 first; batch stays
            # parallel for megacore sharding on v7x.
            dimension_semantics=("parallel", "arbitrary"),
            vmem_limit_bytes=_vmem_limit_bytes()),
    )(xq, xk, xv, wq, bq2, wk, bk2, wv, bv2)


def _reference_mha(xq, xk, xv, params, *, h):
    """Pure-JAX reference mirroring the PyTorch forward semantics."""
    B, S, D = xq.shape
    d_k = D // h

    def lin(x, w, b):
        return x @ w.T + b

    q = lin(xq, params["w0"], params["b0"]).reshape(B, -1, h, d_k).transpose(0, 2, 1, 3)
    k = lin(xk, params["w1"], params["b1"]).reshape(B, -1, h, d_k).transpose(0, 2, 1, 3)
    v = lin(xv, params["w2"], params["b2"]).reshape(B, -1, h, d_k).transpose(0, 2, 1, 3)

    scores = jnp.einsum("bhqd,bhkd->bhqk", q, k) / math.sqrt(d_k)
    p = jax.nn.softmax(scores, axis=-1)
    out = jnp.einsum("bhqk,bhkd->bhqd", p, v)
    out = out.transpose(0, 2, 1, 3).reshape(B, -1, D)
    # final projection = linears[1] (matching the reference module exactly)
    return lin(out, params["w1"], params["b1"])


if __name__ == "__main__":
    def run_case(B, S, D, H, q_tile=None, kv_tile=None, seed=0):
        key = jax.random.PRNGKey(seed)
        keys = jax.random.split(key, 12)
        params = {}
        for i in range(4):
            params[f"w{i}"] = (jax.random.normal(keys[i], (D, D), jnp.float32)
                               * (1.0 / math.sqrt(D)))
            params[f"b{i}"] = jax.random.normal(keys[4 + i], (D,), jnp.float32) * 0.01
        xq = jax.random.normal(keys[8], (B, S, D), jnp.float32)
        xk = jax.random.normal(keys[9], (B, S, D), jnp.float32)
        xv = jax.random.normal(keys[10], (B, S, D), jnp.float32)

        out = jax.block_until_ready(
            multi_headed_attention(xq, xk, xv, params, h=H,
                                   q_tile=q_tile, kv_tile=kv_tile))
        ref = jax.block_until_ready(_reference_mha(xq, xk, xv, params, h=H))
        np.testing.assert_allclose(np.asarray(out), np.asarray(ref),
                                   rtol=5e-3, atol=5e-4)

    # 1) Single-tile path: whole sequence in one q/kv tile.
    run_case(B=2, S=8, D=32, H=4, seed=0)
    # 2) Multi-tile path: exercises the per-batch K/V-projection hoist
    #    (pl.when on the q-tile axis) and the online-softmax KV loop.
    run_case(B=2, S=16, D=32, H=4, q_tile=8, kv_tile=8, seed=1)

    print("KERNEL_OK")
</pallas_src>

<mosaic_0001>
module attributes {stable_mosaic.version = 11 : i64} {
  func.func @_mha_kernel(%arg0: i32, %arg1: i32, %arg2: memref<1x8x32xf32, #tpu.memory_space<vmem>>, %arg3: memref<1x8x32xf32, #tpu.memory_space<vmem>>, %arg4: memref<1x8x32xf32, #tpu.memory_space<vmem>>, %arg5: memref<32x32xf32, #tpu.memory_space<vmem>>, %arg6: memref<1x32xf32, #tpu.memory_space<vmem>>, %arg7: memref<32x32xf32, #tpu.memory_space<vmem>>, %arg8: memref<1x32xf32, #tpu.memory_space<vmem>>, %arg9: memref<32x32xf32, #tpu.memory_space<vmem>>, %arg10: memref<1x32xf32, #tpu.memory_space<vmem>>, %arg11: memref<1x8x32xf32, #tpu.memory_space<vmem>>, %arg12: memref<8x32xf32, #tpu.memory_space<vmem>>, %arg13: memref<8x32xf32, #tpu.memory_space<vmem>>) attributes {dimension_semantics = [#tpu.dimension_semantics<parallel>, #tpu.dimension_semantics<arbitrary>], iteration_bounds = array<i64: 2, 1>, scalar_prefetch = 0 : i64, scratch_operands = 2 : i64, tpu.core_type = #tpu.core_type<tc>, window_params = [{transform_indices = @transform_0, window_bounds = array<i64: 1, 8, 32>}, {pipeline_mode = #tpu.pipeline_mode<synchronous>, transform_indices = @transform_1, window_bounds = array<i64: 1, 8, 32>}, {pipeline_mode = #tpu.pipeline_mode<synchronous>, transform_indices = @transform_2, window_bounds = array<i64: 1, 8, 32>}, {pipeline_mode = #tpu.pipeline_mode<synchronous>, transform_indices = @transform_3, window_bounds = array<i64: 32, 32>}, {pipeline_mode = #tpu.pipeline_mode<synchronous>, transform_indices = @transform_4, window_bounds = array<i64: 1, 32>}, {pipeline_mode = #tpu.pipeline_mode<synchronous>, transform_indices = @transform_5, window_bounds = array<i64: 32, 32>}, {pipeline_mode = #tpu.pipeline_mode<synchronous>, transform_indices = @transform_6, window_bounds = array<i64: 1, 32>}, {pipeline_mode = #tpu.pipeline_mode<synchronous>, transform_indices = @transform_7, window_bounds = array<i64: 32, 32>}, {pipeline_mode = #tpu.pipeline_mode<synchronous>, transform_indices = @transform_8, window_bounds = array<i64: 1, 32>}, {transform_indices = @transform_9, window_bounds = array<i64: 1, 8, 32>}]} {
    %c0_i32 = arith.constant 0 : i32
    %0 = arith.cmpi eq, %arg1, %c0_i32 : i32
    %1 = arith.extui %0 : i1 to i32
    %c0_i32_0 = arith.constant 0 : i32
    %2 = arith.cmpi ne, %1, %c0_i32_0 : i32
    scf.if %2 {
      %c0_26 = arith.constant 0 : index
      %c0_27 = arith.constant 0 : index
      %c0_28 = arith.constant 0 : index
      %55 = vector.load %arg3[%c0_26, %c0_27, %c0_28] : memref<1x8x32xf32, #tpu.memory_space<vmem>>, vector<1x8x32xf32>
      %56 = vector.shape_cast %55 : vector<1x8x32xf32> to vector<8x32xf32>
      %c0_29 = arith.constant 0 : index
      %c0_30 = arith.constant 0 : index
      %57 = vector.load %arg7[%c0_29, %c0_30] : memref<32x32xf32, #tpu.memory_space<vmem>>, vector<32x32xf32>
      %cst_31 = arith.constant dense<0.000000e+00> : vector<8x32xf32>
      %58 = tpu.matmul %56, %57, %cst_31 {dimension_numbers = #tpu.dot_dimension_numbers<[1], [1], [0], [0], [0, 0, 1, 0], [], []>} : vector<8x32xf32>, vector<32x32xf32>, vector<8x32xf32> -> vector<8x32xf32>
      %c0_32 = arith.constant 0 : index
      %c0_33 = arith.constant 0 : index
      %59 = vector.load %arg8[%c0_32, %c0_33] : memref<1x32xf32, #tpu.memory_space<vmem>>, vector<1x32xf32>
      %60 = vector.broadcast %59 : vector<1x32xf32> to vector<8x32xf32>
      %61 = arith.addf %58, %60 : vector<8x32xf32>
      %c0_34 = arith.constant 0 : index
      %c0_35 = arith.constant 0 : index
      %62 = vector.load %arg12[%c0_34, %c0_35] : memref<8x32xf32, #tpu.memory_space<vmem>>, vector<8x32xf32>
      tpu.vector_store %arg12[%c0_34, %c0_35], %61 {strides = array<i32>} : memref<8x32xf32, #tpu.memory_space<vmem>>, vector<8x32xf32>,
      %c0_36 = arith.constant 0 : index
      %c0_37 = arith.constant 0 : index
      %c0_38 = arith.constant 0 : index
      %63 = vector.load %arg4[%c0_36, %c0_37, %c0_38] : memref<1x8x32xf32, #tpu.memory_space<vmem>>, vector<1x8x32xf32>
      %64 = vector.shape_cast %63 : vector<1x8x32xf32> to vector<8x32xf32>
      %c0_39 = arith.constant 0 : index
      %c0_40 = arith.constant 0 : index
      %65 = vector.load %arg9[%c0_39, %c0_40] : memref<32x32xf32, #tpu.memory_space<vmem>>, vector<32x32xf32>
      %cst_41 = arith.constant dense<0.000000e+00> : vector<8x32xf32>
      %66 = tpu.matmul %64, %65, %cst_41 {dimension_numbers = #tpu.dot_dimension_numbers<[1], [1], [0], [0], [0, 0, 1, 0], [], []>} : vector<8x32xf32>, vector<32x32xf32>, vector<8x32xf32> -> vector<8x32xf32>
      %c0_42 = arith.constant 0 : index
      %c0_43 = arith.constant 0 : index
      %67 = vector.load %arg10[%c0_42, %c0_43] : memref<1x32xf32, #tpu.memory_space<vmem>>, vector<1x32xf32>
      %68 = vector.broadcast %67 : vector<1x32xf32> to vector<8x32xf32>
      %69 = arith.addf %66, %68 : vector<8x32xf32>
      %c0_44 = arith.constant 0 : index
      %c0_45 = arith.constant 0 : index
      %70 = vector.load %arg13[%c0_44, %c0_45] : memref<8x32xf32, #tpu.memory_space<vmem>>, vector<8x32xf32>
      tpu.vector_store %arg13[%c0_44, %c0_45], %69 {strides = array<i32>} : memref<8x32xf32, #tpu.memory_space<vmem>>, vector<8x32xf32>,
    } else {
    }
    %c0 = arith.constant 0 : index
    %c0_1 = arith.constant 0 : index
    %c0_2 = arith.constant 0 : index
    %3 = vector.load %arg2[%c0, %c0_1, %c0_2] : memref<1x8x32xf32, #tpu.memory_space<vmem>>, vector<1x8x32xf32>
    %4 = vector.shape_cast %3 : vector<1x8x32xf32> to vector<8x32xf32>
    %c0_3 = arith.constant 0 : index
    %c0_4 = arith.constant 0 : index
    %5 = vector.load %arg5[%c0_3, %c0_4] : memref<32x32xf32, #tpu.memory_space<vmem>>, vector<32x32xf32>
    %cst = arith.constant dense<0.000000e+00> : vector<8x32xf32>
    %6 = tpu.matmul %4, %5, %cst {dimension_numbers = #tpu.dot_dimension_numbers<[1], [1], [0], [0], [0, 0, 1, 0], [], []>} : vector<8x32xf32>, vector<32x32xf32>, vector<8x32xf32> -> vector<8x32xf32>
    %c0_5 = arith.constant 0 : index
    %c0_6 = arith.constant 0 : index
    %7 = vector.load %arg6[%c0_5, %c0_6] : memref<1x32xf32, #tpu.memory_space<vmem>>, vector<1x32xf32>
    %8 = vector.broadcast %7 : vector<1x32xf32> to vector<8x32xf32>
    %9 = arith.addf %6, %8 : vector<8x32xf32>
    %cst_7 = arith.constant 0.353553385 : f32
    %10 = vector.broadcast %cst_7 : f32 to vector<8x32xf32>
    %11 = arith.mulf %9, %10 : vector<8x32xf32>
    %12 = vector.shape_cast %11 : vector<8x32xf32> to vector<8x4x8xf32>
    %13 = tpu.transpose %12, [1, 0, 2] : vector<8x4x8xf32> -> vector<4x8x8xf32>
    %cst_8 = arith.constant 0xFF800000 : f32
    %14 = vector.broadcast %cst_8 : f32 to vector<4x8x1xf32>
    %cst_9 = arith.constant 0.000000e+00 : f32
    %15 = vector.broadcast %cst_9 : f32 to vector<4x8x1xf32>
    %cst_10 = arith.constant 0.000000e+00 : f32
    %16 = vector.broadcast %cst_10 : f32 to vector<4x8x8xf32>
    %c0_i32_11 = arith.constant 0 : i32
    %17 = tpu.assume_multiple %c0_i32_11, 8 : i32
    %18 = arith.index_cast %17 : i32 to index
    %c0_12 = arith.constant 0 : index
    %19 = vector.load %arg12[%18, %c0_12] : memref<8x32xf32, #tpu.memory_space<vmem>>, vector<8x32xf32>
    %20 = arith.index_cast %17 : i32 to index
    %c0_13 = arith.constant 0 : index
    %21 = vector.load %arg13[%20, %c0_13] : memref<8x32xf32, #tpu.memory_space<vmem>>, vector<8x32xf32>
    %22 = vector.shape_cast %19 : vector<8x32xf32> to vector<8x4x8xf32>
    %23 = tpu.transpose %22, [1, 0, 2] : vector<8x4x8xf32> -> vector<4x8x8xf32>
    %24 = vector.shape_cast %21 : vector<8x32xf32> to vector<8x4x8xf32>
    %25 = tpu.transpose %24, [1, 0, 2] : vector<8x4x8xf32> -> vector<4x8x8xf32>
    "tpu.trace_start"() <{level = 10 : i32, message = "hqd,hkd->hqk"}> : () -> ()
    %cst_14 = arith.constant dense<0.000000e+00> : vector<4x8x8xf32>
    %26 = tpu.matmul %13, %23, %cst_14 {dimension_numbers = #tpu.dot_dimension_numbers<[2], [2], [1], [1], [0, 0, 0, 1, 1, 1], [0], [0]>} : vector<4x8x8xf32>, vector<4x8x8xf32>, vector<4x8x8xf32> -> vector<4x8x8xf32>
    "tpu.trace_stop"() : () -> ()
    %cst_15 = arith.constant dense<0xFF800000> : vector<4x8xf32>
    %27 = vector.multi_reduction <maximumf>, %26, %cst_15 [2] : vector<4x8x8xf32> to vector<4x8xf32>
    %28 = vector.shape_cast %27 : vector<4x8xf32> to vector<4x8x1xf32>
    %29 = arith.maximumf %14, %28 : vector<4x8x1xf32>
    %30 = arith.subf %14, %29 : vector<4x8x1xf32>
    %31 = math.exp %30 : vector<4x8x1xf32>
    %32 = vector.broadcast %29 : vector<4x8x1xf32> to vector<4x8x8xf32>
    %33 = arith.subf %26, %32 : vector<4x8x8xf32>
    %34 = math.exp %33 : vector<4x8x8xf32>
    %35 = arith.mulf %31, %15 : vector<4x8x1xf32>
    %cst_16 = arith.constant dense<0.000000e+00> : vector<4x8xf32>
    %36 = vector.multi_reduction <add>, %34, %cst_16 [2] : vector<4x8x8xf32> to vector<4x8xf32>
    %37 = vector.shape_cast %36 : vector<4x8xf32> to vector<4x8x1xf32>
    %38 = arith.addf %35, %37 : vector<4x8x1xf32>
    "tpu.trace_start"() <{level = 10 : i32, message = "hqk,hkd->hqd"}> : () -> ()
    %cst_17 = arith.constant dense<0.000000e+00> : vector<4x8x8xf32>
    %39 = tpu.matmul %34, %25, %cst_17 {dimension_numbers = #tpu.dot_dimension_numbers<[2], [1], [1], [2], [0, 0, 0, 1, 1, 2], [0], [0]>} : vector<4x8x8xf32>, vector<4x8x8xf32>, vector<4x8x8xf32> -> vector<4x8x8xf32>
    "tpu.trace_stop"() : () -> ()
    %40 = vector.broadcast %31 : vector<4x8x1xf32> to vector<4x8x8xf32>
    %41 = arith.mulf %40, %16 : vector<4x8x8xf32>
    %42 = arith.addf %41, %39 : vector<4x8x8xf32>
    %43 = vector.broadcast %38 : vector<4x8x1xf32> to vector<4x8x8xf32>
    %44 = arith.divf %42, %43 : vector<4x8x8xf32>
    %45 = tpu.transpose %44, [1, 0, 2] : vector<4x8x8xf32> -> vector<8x4x8xf32>
    %46 = vector.shape_cast %45 : vector<8x4x8xf32> to vector<8x32xf32>
    %c0_18 = arith.constant 0 : index
    %c0_19 = arith.constant 0 : index
    %47 = vector.load %arg7[%c0_18, %c0_19] : memref<32x32xf32, #tpu.memory_space<vmem>>, vector<32x32xf32>
    %cst_20 = arith.constant dense<0.000000e+00> : vector<8x32xf32>
    %48 = tpu.matmul %46, %47, %cst_20 {dimension_numbers = #tpu.dot_dimension_numbers<[1], [1], [0], [0], [0, 0, 1, 0], [], []>} : vector<8x32xf32>, vector<32x32xf32>, vector<8x32xf32> -> vector<8x32xf32>
    %c0_21 = arith.constant 0 : index
    %c0_22 = arith.constant 0 : index
    %49 = vector.load %arg8[%c0_21, %c0_22] : memref<1x32xf32, #tpu.memory_space<vmem>>, vector<1x32xf32>
    %50 = vector.broadcast %49 : vector<1x32xf32> to vector<8x32xf32>
    %51 = arith.addf %48, %50 : vector<8x32xf32>
    %c0_23 = arith.constant 0 : index
    %c0_24 = arith.constant 0 : index
    %c0_25 = arith.constant 0 : index
    %52 = vector.load %arg11[%c0_23, %c0_24, %c0_25] : memref<1x8x32xf32, #tpu.memory_space<vmem>>, vector<1x8x32xf32>
    %53 = vector.shape_cast %52 : vector<1x8x32xf32> to vector<8x32xf32>
    %54 = vector.shape_cast %51 : vector<8x32xf32> to vector<1x8x32xf32>
    tpu.vector_store %arg11[%c0_23, %c0_24, %c0_25], %54 {strides = array<i32>} : memref<1x8x32xf32, #tpu.memory_space<vmem>>, vector<1x8x32xf32>,
    return
  }
  func.func @transform_0(%arg0: i32, %arg1: i32) -> (i32, i32, i32) {
    %c0_i32 = arith.constant 0 : i32
    %c0_i32_0 = arith.constant 0 : i32
    return %arg0, %arg1, %c0_i32 : i32, i32, i32
  }
  func.func @transform_1(%arg0: i32, %arg1: i32) -> (i32, i32, i32) {
    %c0_i32 = arith.constant 0 : i32
    %c0_i32_0 = arith.constant 0 : i32
    %c0_i32_1 = arith.constant 0 : i32
    return %arg0, %c0_i32, %c0_i32_0 : i32, i32, i32
  }
  func.func @transform_2(%arg0: i32, %arg1: i32) -> (i32, i32, i32) {
    %c0_i32 = arith.constant 0 : i32
    %c0_i32_0 = arith.constant 0 : i32
    %c0_i32_1 = arith.constant 0 : i32
    return %arg0, %c0_i32, %c0_i32_0 : i32, i32, i32
  }
  func.func @transform_3(%arg0: i32, %arg1: i32) -> (i32, i32) {
    %c0_i32 = arith.constant 0 : i32
    %c0_i32_0 = arith.constant 0 : i32
    %c0_i32_1 = arith.constant 0 : i32
    return %c0_i32, %c0_i32_0 : i32, i32
  }
  func.func @transform_4(%arg0: i32, %arg1: i32) -> (i32, i32) {
    %c0_i32 = arith.constant 0 : i32
    %c0_i32_0 = arith.constant 0 : i32
    %c0_i32_1 = arith.constant 0 : i32
    return %c0_i32, %c0_i32_0 : i32, i32
  }
  func.func @transform_5(%arg0: i32, %arg1: i32) -> (i32, i32) {
    %c0_i32 = arith.constant 0 : i32
    %c0_i32_0 = arith.constant 0 : i32
    %c0_i32_1 = arith.constant 0 : i32
    return %c0_i32, %c0_i32_0 : i32, i32
  }
  func.func @transform_6(%arg0: i32, %arg1: i32) -> (i32, i32) {
    %c0_i32 = arith.constant 0 : i32
    %c0_i32_0 = arith.constant 0 : i32
    %c0_i32_1 = arith.constant 0 : i32
    return %c0_i32, %c0_i32_0 : i32, i32
  }
  func.func @transform_7(%arg0: i32, %arg1: i32) -> (i32, i32) {
    %c0_i32 = arith.constant 0 : i32
    %c0_i32_0 = arith.constant 0 : i32
    %c0_i32_1 = arith.constant 0 : i32
    return %c0_i32, %c0_i32_0 : i32, i32
  }
  func.func @transform_8(%arg0: i32, %arg1: i32) -> (i32, i32) {
    %c0_i32 = arith.constant 0 : i32
    %c0_i32_0 = arith.constant 0 : i32
    %c0_i32_1 = arith.constant 0 : i32
    return %c0_i32, %c0_i32_0 : i32, i32
  }
  func.func @transform_9(%arg0: i32, %arg1: i32) -> (i32, i32, i32) {
    %c0_i32 = arith.constant 0 : i32
    %c0_i32_0 = arith.constant 0 : i32
    return %arg0, %arg1, %c0_i32 : i32, i32, i32
  }
}

</mosaic_0001>

<llo_original>
// kernel: tpu_custom_call.1
$region0: #{tpu_custom_call.1}
  #allocation0 [shape = 'u32[]', space=smem, size = 0x4, offset = 0x4, fixed_abs, tag = 'smem constant byte address 0x4 - core index']
  #allocation1 [shape = 'u32[72,128]{1,0:T(1,128)}', space=vmem, size = 0x9000, scoped, tag = 'internal scratch']
  #allocation2 [shape = 'f32[8,32]{1,0:T(8,128)}', space=vmem, size = 0x1000, scoped, tag = 'scratch operand']
  #allocation3 [shape = 'f32[8,32]{1,0:T(8,128)}', space=vmem, size = 0x1000, scoped, tag = 'scratch operand']
  %s0 = inlined_call_operand.hbm [shape: f32[2,8,32], index: 0, kind: input, shape index: {}]
  %s1 = inlined_call_operand.hbm [shape: f32[2,8,32], index: 1, kind: input, shape index: {}]
  %s2 = inlined_call_operand.hbm [shape: f32[2,8,32], index: 2, kind: input, shape index: {}]
  %s3 = inlined_call_operand.hbm [shape: f32[32,32], index: 3, kind: input, shape index: {}]
  %s4 = inlined_call_operand.vmem [shape: f32[1,32], index: 4, kind: input, shape index: {}]
  %s5 = inlined_call_operand.hbm [shape: f32[32,32], index: 5, kind: input, shape index: {}]
  %s6 = inlined_call_operand.vmem [shape: f32[1,32], index: 6, kind: input, shape index: {}]
  %s7 = inlined_call_operand.hbm [shape: f32[32,32], index: 7, kind: input, shape index: {}]
  %s8 = inlined_call_operand.vmem [shape: f32[1,32], index: 8, kind: input, shape index: {}]
  %s9 = inlined_call_operand.hbm [shape: f32[2,8,32], index: 9, kind: output, shape index: {}]
  %s10 = sld [smem:[#allocation0]]
  $region97: #{tpu_custom_call.1} parent=0
    _
  %s12 = ssub.s32 1, %s10
  %s13 = scalar_select 0, %s12, %s10
  $region1: #{tpu_custom_call.1} parent=0
    #allocation4 [shape = 'u8[8192]{0}', space=vmem, size = 0x2000, scoped, tag = 'input window, operand 0']
    #allocation5 [shape = 's32[2]{0}', space=sflag, size = 0x8, scoped, tag = 'scoped memory for tpu_custom_call.1']
    #allocation6 [shape = 's32[2]{0}', space=sflag, size = 0x8, scoped, tag = 'scoped memory for tpu_custom_call.1']
    #allocation7 [shape = 'u8[4096]{0}', space=vmem, size = 0x1000, scoped, tag = 'input window, operand 1, single buffered']
    #allocation8 [shape = 's32[1]{0}', space=sflag, size = 0x4, scoped, tag = 'scoped memory for tpu_custom_call.1']
    #allocation9 [shape = 'u8[4096]{0}', space=vmem, size = 0x1000, scoped, tag = 'input window, operand 2, single buffered']
    #allocation10 [shape = 'u8[16384]{0}', space=vmem, size = 0x4000, scoped, tag = 'input window, operand 3, single buffered']
    #allocation11 [shape = 's32[1]{0}', space=sflag, size = 0x4, scoped, tag = 'scoped memory for tpu_custom_call.1']
    #allocation12 [shape = 'u8[16384]{0}', space=vmem, size = 0x4000, scoped, tag = 'input window, operand 5, single buffered']
    #allocation13 [shape = 'u8[16384]{0}', space=vmem, size = 0x4000, scoped, tag = 'input window, operand 7, single buffered']
    #allocation14 [shape = 's32[1]{0}', space=sflag, size = 0x4, scoped, tag = 'scoped memory for tpu_custom_call.1']
    #allocation15 [shape = 'u8[8192]{0}', space=vmem, size = 0x2000, scoped, tag = 'output window, operand 0']
    %14 = vsyncpa [#allocation5], 0
    %s15 = scalar_lea.sflag [#allocation5], 1
    %16 = vsyncpa %s15, 0
    %17 = vsyncpa [#allocation8], 0
    %18 = vsyncpa [#allocation11], 0
    %19 = vsyncpa [#allocation14], 0
    %20 = vsyncpa [#allocation6], 0
    %s21 = scalar_lea.sflag [#allocation6], 1
    %22 = vsyncpa %s21, 0
    loop: start=0, step=1, limit=4
    $region2: #{tpu_custom_call.1} parent=1 // loop_pre_header
      _
    $region3: #{tpu_custom_call.1} parent=1 // loop_header
      %s24 = sphi 0, %s28
      %p25 = scmp.ge.s32.totalorder %s24, 4
      %s31 = sphi 0, %s43
      %s32 = sphi 0, %s39
      %s33 = sphi 0, %s31
      %s34 = sphi 0, %s32
      %s35 = sphi 0, %s33
      %s36 = sphi 0, %s34
      %s48 = sphi 0, %s50
      %s51 = sphi 0, %s48
      %s52 = sphi 0, %s51
      %s68 = sphi 0, %s52
      %s74 = sphi 0, %s76
      %s77 = sphi 0, %s74
      %s78 = sphi 0, %s77
      %s94 = sphi 0, %s78
      %s100 = sphi 0, %s102
      %s103 = sphi 0, %s100
      %s104 = sphi 0, %s103
      %s120 = sphi 0, %s104
      %s124 = sphi 0, %s124
      %s126 = sphi 0, %s124
      %s127 = sphi 0, %s126
      %s141 = sphi 0, %s127
      %s145 = sphi 0, %s145
      %s147 = sphi 0, %s145
      %s148 = sphi 0, %s147
      %s162 = sphi 0, %s148
      %s166 = sphi 0, %s166
      %s168 = sphi 0, %s166
      %s169 = sphi 0, %s168
      %s183 = sphi 0, %s169
      %s187 = sphi 0, %s187
      %s189 = sphi 0, %s187
      %s190 = sphi 0, %s189
      %s204 = sphi 0, %s190
      %s208 = sphi 0, %s208
      %s210 = sphi 0, %s208
      %s211 = sphi 0, %s210
      %s225 = sphi 0, %s211
      %s229 = sphi 0, %s229
      %s231 = sphi 0, %s229
      %s232 = sphi 0, %s231
      %s246 = sphi 0, %s232
      %s254 = sphi 0, %s256
      %s257 = sphi 0, %s254
      %s258 = sphi 0, %s257
      %s274 = sphi 0, %s258
    $region4: #{tpu_custom_call.1} parent=1 // loop_header_branch
      %27 = sbr.rel (%p25) target = $region8
    $region5: #{tpu_custom_call.1} parent=1 // loop_body
      %s29 = ssub.s32 %s24, 1
      %s30 = ssub.s32 %s24, 2
      %s37 = sadd.s32 1, %s32
      %p38 = scmp.ge.s32.totalorder %s37, 1
      %s39 = scalar_select %p38, 0, %s37
      %s40 = sadd.s32 1, %s31
      %s41 = scalar_select %p38, %s40, %s31
      %p42 = scmp.ge.s32.totalorder %s41, 2
      %s43 = scalar_select %p42, 0, %s41
      %s44 = ssub.s32 %s31, %s43
      %s45 = ssub.s32 %s32, %s39
      %s46 = sor.u32 %s44, %s45
      %p47 = scmp.eq.s32.totalorder %s46, 0
      %s49 = sadd.s32 %s48, 1
      %s50 = scalar_select %p47, %s48, %s49
      %p53 = pneg %p47
      %p54 = scmp.eq.s32.totalorder %s24, 1
      %p55 = por %p53, %p54
      %p56 = scmp.ne.s32.totalorder %s48, %s51
      %p57 = scmp.eq.s32.totalorder %s24, 0
      %p58 = por %p56, %p57
      %p59 = scmp.ne.s32.totalorder %s48, %s51
      %p60 = scmp.eq.s32.totalorder %s29, 1
      %p61 = por %p59, %p60
      %p62 = scmp.ne.s32.totalorder %s51, %s52
      %p63 = scmp.eq.s32.totalorder %s29, 0
      %p64 = por %p62, %p63
      %p65 = scmp.ne.s32.totalorder %s51, %s52
      %p66 = scmp.eq.s32.totalorder %s30, 1
      %p67 = por %p65, %p66
      %p69 = scmp.ne.s32.totalorder %s52, %s68
      %p70 = scmp.eq.s32.totalorder %s30, 0
      %p71 = por %p69, %p70
      %s72 = ssub.s32 %s31, %s43
      %p73 = scmp.eq.s32.totalorder %s72, 0
      %s75 = sadd.s32 %s74, 1
      %s76 = scalar_select %p73, %s74, %s75
      %p79 = pneg %p73
      %p80 = scmp.eq.s32.totalorder %s24, 1
      %p81 = por %p79, %p80
      %p82 = scmp.ne.s32.totalorder %s74, %s77
      %p83 = scmp.eq.s32.totalorder %s24, 0
      %p84 = por %p82, %p83
      %p85 = scmp.ne.s32.totalorder %s74, %s77
      %p86 = scmp.eq.s32.totalorder %s29, 1
      %p87 = por %p85, %p86
      %p88 = scmp.ne.s32.totalorder %s77, %s78
      %p89 = scmp.eq.s32.totalorder %s29, 0
      %p90 = por %p88, %p89
      %p91 = scmp.ne.s32.totalorder %s77, %s78
      %p92 = scmp.eq.s32.totalorder %s30, 1
      %p93 = por %p91, %p92
      %p95 = scmp.ne.s32.totalorder %s78, %s94
      %p96 = scmp.eq.s32.totalorder %s30, 0
      %p97 = por %p95, %p96
      %s98 = ssub.s32 %s31, %s43
      %p99 = scmp.eq.s32.totalorder %s98, 0
      %s101 = sadd.s32 %s100, 1
      %s102 = scalar_select %p99, %s100, %s101
      %p105 = pneg %p99
      %p106 = scmp.eq.s32.totalorder %s24, 1
      %p107 = por %p105, %p106
      %p108 = scmp.ne.s32.totalorder %s100, %s103
      %p109 = scmp.eq.s32.totalorder %s24, 0
      %p110 = por %p108, %p109
      %p111 = scmp.ne.s32.totalorder %s100, %s103
      %p112 = scmp.eq.s32.totalorder %s29, 1
      %p113 = por %p111, %p112
      %p114 = scmp.ne.s32.totalorder %s103, %s104
      %p115 = scmp.eq.s32.totalorder %s29, 0
      %p116 = por %p114, %p115
      %p117 = scmp.ne.s32.totalorder %s103, %s104
      %p118 = scmp.eq.s32.totalorder %s30, 1
      %p119 = por %p117, %p118
      %p121 = scmp.ne.s32.totalorder %s104, %s120
      %p122 = scmp.eq.s32.totalorder %s30, 0
      %p123 = por %p121, %p122
      %s125 = sadd.s32 %s124, 1
      %p128 = scmp.eq.s32.totalorder %s24, 1
      %p129 = scmp.ne.s32.totalorder %s124, %s126
      %p130 = scmp.eq.s32.totalorder %s24, 0
      %p131 = por %p129, %p130
      %p132 = scmp.ne.s32.totalorder %s124, %s126
      %p133 = scmp.eq.s32.totalorder %s29, 1
      %p134 = por %p132, %p133
      %p135 = scmp.ne.s32.totalorder %s126, %s127
      %p136 = scmp.eq.s32.totalorder %s29, 0
      %p137 = por %p135, %p136
      %p138 = scmp.ne.s32.totalorder %s126, %s127
      %p139 = scmp.eq.s32.totalorder %s30, 1
      %p140 = por %p138, %p139
      %p142 = scmp.ne.s32.totalorder %s127, %s141
      %p143 = scmp.eq.s32.totalorder %s30, 0
      %p144 = por %p142, %p143
      %s146 = sadd.s32 %s145, 1
      %p149 = scmp.eq.s32.totalorder %s24, 1
      %p150 = scmp.ne.s32.totalorder %s145, %s147
      %p151 = scmp.eq.s32.totalorder %s24, 0
      %p152 = por %p150, %p151
      %p153 = scmp.ne.s32.totalorder %s145, %s147
      %p154 = scmp.eq.s32.totalorder %s29, 1
      %p155 = por %p153, %p154
      %p156 = scmp.ne.s32.totalorder %s147, %s148
      %p157 = scmp.eq.s32.totalorder %s29, 0
      %p158 = por %p156, %p157
      %p159 = scmp.ne.s32.totalorder %s147, %s148
      %p160 = scmp.eq.s32.totalorder %s30, 1
      %p161 = por %p159, %p160
      %p163 = scmp.ne.s32.totalorder %s148, %s162
      %p164 = scmp.eq.s32.totalorder %s30, 0
      %p165 = por %p163, %p164
      %s167 = sadd.s32 %s166, 1
      %p170 = scmp.eq.s32.totalorder %s24, 1
      %p171 = scmp.ne.s32.totalorder %s166, %s168
      %p172 = scmp.eq.s32.totalorder %s24, 0
      %p173 = por %p171, %p172
      %p174 = scmp.ne.s32.totalorder %s166, %s168
      %p175 = scmp.eq.s32.totalorder %s29, 1
      %p176 = por %p174, %p175
      %p177 = scmp.ne.s32.totalorder %s168, %s169
      %p178 = scmp.eq.s32.totalorder %s29, 0
      %p179 = por %p177, %p178
      %p180 = scmp.ne.s32.totalorder %s168, %s169
      %p181 = scmp.eq.s32.totalorder %s30, 1
      %p182 = por %p180, %p181
      %p184 = scmp.ne.s32.totalorder %s169, %s183
      %p185 = scmp.eq.s32.totalorder %s30, 0
      %p186 = por %p184, %p185
      %s188 = sadd.s32 %s187, 1
      %p191 = scmp.eq.s32.totalorder %s24, 1
      %p192 = scmp.ne.s32.totalorder %s187, %s189
      %p193 = scmp.eq.s32.totalorder %s24, 0
      %p194 = por %p192, %p193
      %p195 = scmp.ne.s32.totalorder %s187, %s189
      %p196 = scmp.eq.s32.totalorder %s29, 1
      %p197 = por %p195, %p196
      %p198 = scmp.ne.s32.totalorder %s189, %s190
      %p199 = scmp.eq.s32.totalorder %s29, 0
      %p200 = por %p198, %p199
      %p201 = scmp.ne.s32.totalorder %s189, %s190
      %p202 = scmp.eq.s32.totalorder %s30, 1
      %p203 = por %p201, %p202
      %p205 = scmp.ne.s32.totalorder %s190, %s204
      %p206 = scmp.eq.s32.totalorder %s30, 0
      %p207 = por %p205, %p206
      %s209 = sadd.s32 %s208, 1
      %p212 = scmp.eq.s32.totalorder %s24, 1
      %p213 = scmp.ne.s32.totalorder %s208, %s210
      %p214 = scmp.eq.s32.totalorder %s24, 0
      %p215 = por %p213, %p214
      %p216 = scmp.ne.s32.totalorder %s208, %s210
      %p217 = scmp.eq.s32.totalorder %s29, 1
      %p218 = por %p216, %p217
      %p219 = scmp.ne.s32.totalorder %s210, %s211
      %p220 = scmp.eq.s32.totalorder %s29, 0
      %p221 = por %p219, %p220
      %p222 = scmp.ne.s32.totalorder %s210, %s211
      %p223 = scmp.eq.s32.totalorder %s30, 1
      %p224 = por %p222, %p223
      %p226 = scmp.ne.s32.totalorder %s211, %s225
      %p227 = scmp.eq.s32.totalorder %s30, 0
      %p228 = por %p226, %p227
      %s230 = sadd.s32 %s229, 1
      %p233 = scmp.eq.s32.totalorder %s24, 1
      %p234 = scmp.ne.s32.totalorder %s229, %s231
      %p235 = scmp.eq.s32.totalorder %s24, 0
      %p236 = por %p234, %p235
      %p237 = scmp.ne.s32.totalorder %s229, %s231
      %p238 = scmp.eq.s32.totalorder %s29, 1
      %p239 = por %p237, %p238
      %p240 = scmp.ne.s32.totalorder %s231, %s232
      %p241 = scmp.eq.s32.totalorder %s29, 0
      %p242 = por %p240, %p241
      %p243 = scmp.ne.s32.totalorder %s231, %s232
      %p244 = scmp.eq.s32.totalorder %s30, 1
      %p245 = por %p243, %p244
      %p247 = scmp.ne.s32.totalorder %s232, %s246
      %p248 = scmp.eq.s32.totalorder %s30, 0
      %p249 = por %p247, %p248
      %s250 = ssub.s32 %s31, %s43
      %s251 = ssub.s32 %s32, %s39
      %s252 = sor.u32 %s250, %s251
      %p253 = scmp.eq.s32.totalorder %s252, 0
      %s255 = sadd.s32 %s254, 1
      %s256 = scalar_select %p253, %s254, %s255
      %p259 = pneg %p253
      %p260 = scmp.eq.s32.totalorder %s24, 1
      %p261 = por %p259, %p260
      %p262 = scmp.ne.s32.totalorder %s254, %s257
      %p263 = scmp.eq.s32.totalorder %s24, 0
      %p264 = por %p262, %p263
      %p265 = scmp.ne.s32.totalorder %s254, %s257
      %p266 = scmp.eq.s32.totalorder %s29, 1
      %p267 = por %p265, %p266
      %p268 = scmp.ne.s32.totalorder %s257, %s258
      %p269 = scmp.eq.s32.totalorder %s29, 0
      %p270 = por %p268, %p269
      %p271 = scmp.ne.s32.totalorder %s257, %s258
      %p272 = scmp.eq.s32.totalorder %s30, 1
      %p273 = por %p271, %p272
      %p275 = scmp.ne.s32.totalorder %s258, %s274
      %p276 = scmp.eq.s32.totalorder %s30, 0
      %p277 = por %p275, %p276
      %p278 = scmp.le.s32.totalorder 1, %s24
      %p279 = scmp.lt.s32.totalorder %s24, 3
      %p280 = pnand %p278, %p279
      %p281 = pneg %p280
      // Predicated region
      $region9: #{tpu_custom_call.1} parent=5 // pred_check
        _
      $region10: #{tpu_custom_call.1} parent=5 // pred_check_branch
        %283 = sbr.rel (%p280) target = $region12
      $region11: #{tpu_custom_call.1} parent=5 // pred_region
        %s284 = ssub.s32 %s24, 1
        // Predicated region
        $region13: #{tpu_custom_call.1} parent=11 // pred_check
          %p285 = pneg %p90
        $region14: #{tpu_custom_call.1} parent=11 // pred_check_branch
          %287 = sbr.rel (%p285) target = $region16
        $region15: #{tpu_custom_call.1} parent=11 // pred_region
          %289 = vsyncadd [#allocation8], 0
          %s290 = smul.addr %s33, 8
          %s291 = scalar_lea.hbm %s1, %s290
          %s293 = sshll.u32 %s291, 4
          %s294 = int_to_ptr.hbm [resolvable:$true] %s293
          %s295 = sshll.u32 [#allocation7], 4
          %s296 = int_to_ptr.vmem [resolvable:$true] %s295
          %298 = dma.hbm_to_vmem [thread:$0]  %s294, 128, %s296, [#allocation8]
        $region16: #{tpu_custom_call.1} parent=11 // pred_fallthru
          _
        // Predicated region
        $region17: #{tpu_custom_call.1} parent=11 // pred_check
          %p299 = pneg %p116
        $region18: #{tpu_custom_call.1} parent=11 // pred_check_branch
          %301 = sbr.rel (%p299) target = $region20
        $region19: #{tpu_custom_call.1} parent=11 // pred_region
          %303 = vsyncadd [#allocation8], 0
          %s304 = smul.addr %s33, 8
          %s305 = scalar_lea.hbm %s2, %s304
          %s307 = sshll.u32 %s305, 4
          %s308 = int_to_ptr.hbm [resolvable:$true] %s307
          %s309 = sshll.u32 [#allocation9], 4
          %s310 = int_to_ptr.vmem [resolvable:$true] %s309
          %312 = dma.hbm_to_vmem [thread:$0]  %s308, 128, %s310, [#allocation8]
        $region20: #{tpu_custom_call.1} parent=11 // pred_fallthru
          _
        // Predicated region
        $region21: #{tpu_custom_call.1} parent=11 // pred_check
          %p313 = pneg %p137
        $region22: #{tpu_custom_call.1} parent=11 // pred_check_branch
          %315 = sbr.rel (%p313) target = $region24
        $region23: #{tpu_custom_call.1} parent=11 // pred_region
          %317 = vsyncadd [#allocation11], 0
          %s318 = sshll.u32 %s3, 4
          %s319 = int_to_ptr.hbm [resolvable:$true] %s318
          %s320 = sshll.u32 [#allocation10], 4
          %s321 = int_to_ptr.vmem [resolvable:$true] %s320
          %326 = dma.hbm_to_vmem [thread:$0]  %s319, 512, %s321, [#allocation11], 128, 128, 8
        $region24: #{tpu_custom_call.1} parent=11 // pred_fallthru
          _
        // Predicated region
        $region25: #{tpu_custom_call.1} parent=11 // pred_check
          %p327 = pneg %p158
        $region26: #{tpu_custom_call.1} parent=11 // pred_check_branch
          %329 = sbr.rel (%p327) target = $region28
        $region27: #{tpu_custom_call.1} parent=11 // pred_region
          _
        $region28: #{tpu_custom_call.1} parent=11 // pred_fallthru
          _
        // Predicated region
        $region29: #{tpu_custom_call.1} parent=11 // pred_check
          %p330 = pneg %p179
        $region30: #{tpu_custom_call.1} parent=11 // pred_check_branch
          %332 = sbr.rel (%p330) target = $region32
        $region31: #{tpu_custom_call.1} parent=11 // pred_region
          %334 = vsyncadd [#allocation11], 0
          %s335 = sshll.u32 %s5, 4
          %s336 = int_to_ptr.hbm [resolvable:$true] %s335
          %s337 = sshll.u32 [#allocation12], 4
          %s338 = int_to_ptr.vmem [resolvable:$true] %s337
          %343 = dma.hbm_to_vmem [thread:$0]  %s336, 512, %s338, [#allocation11], 128, 128, 8
        $region32: #{tpu_custom_call.1} parent=11 // pred_fallthru
          _
        // Predicated region
        $region33: #{tpu_custom_call.1} parent=11 // pred_check
          %p344 = pneg %p200
        $region34: #{tpu_custom_call.1} parent=11 // pred_check_branch
          %346 = sbr.rel (%p344) target = $region36
        $region35: #{tpu_custom_call.1} parent=11 // pred_region
          _
        $region36: #{tpu_custom_call.1} parent=11 // pred_fallthru
          _
        // Predicated region
        $region37: #{tpu_custom_call.1} parent=11 // pred_check
          %p347 = pneg %p221
        $region38: #{tpu_custom_call.1} parent=11 // pred_check_branch
          %349 = sbr.rel (%p347) target = $region40
        $region39: #{tpu_custom_call.1} parent=11 // pred_region
          %351 = vsyncadd [#allocation14], 0
          %s352 = sshll.u32 %s7, 4
          %s353 = int_to_ptr.hbm [resolvable:$true] %s352
          %s354 = sshll.u32 [#allocation13], 4
          %s355 = int_to_ptr.vmem [resolvable:$true] %s354
          %360 = dma.hbm_to_vmem [thread:$0]  %s353, 512, %s355, [#allocation14], 128, 128, 8
        $region40: #{tpu_custom_call.1} parent=11 // pred_fallthru
          _
        // Predicated region
        $region41: #{tpu_custom_call.1} parent=11 // pred_check
          %p361 = pneg %p242
        $region42: #{tpu_custom_call.1} parent=11 // pred_check_branch
          %363 = sbr.rel (%p361) target = $region44
        $region43: #{tpu_custom_call.1} parent=11 // pred_region
          _
        $region44: #{tpu_custom_call.1} parent=11 // pred_fallthru
          _
      $region12: #{tpu_custom_call.1} parent=5 // pred_fallthru
        _
      %p364 = scmp.lt.s32.totalorder %s24, 2
      // Predicated region
      $region45: #{tpu_custom_call.1} parent=5 // pred_check
        %p365 = pneg %p364
      $region46: #{tpu_custom_call.1} parent=5 // pred_check_branch
        %367 = sbr.rel (%p365) target = $region48
      $region47: #{tpu_custom_call.1} parent=5 // pred_region
        // Predicated region
        $region49: #{tpu_custom_call.1} parent=47 // pred_check
          %p368 = pneg %p58
        $region50: #{tpu_custom_call.1} parent=47 // pred_check_branch
          %370 = sbr.rel (%p368) target = $region52
        $region51: #{tpu_custom_call.1} parent=47 // pred_region
          %s371 = sand.u32 %s48, 1
          %s372 = scalar_lea.sflag [#allocation5], %s371
          %s373 = sand.u32 %s48, 1
          %s374 = smul.addr %s373, 8
          %s375 = scalar_lea.vmem [#allocation4], %s374
          %377 = vsyncadd %s372, 0
          %s378 = sadd.s32 %s32, %s31
          %s379 = smul.addr %s378, 8
          %s380 = scalar_lea.hbm %s0, %s379
          %s382 = sshll.u32 %s380, 4
          %s383 = int_to_ptr.hbm [resolvable:$true] %s382
          %s384 = sshll.u32 %s375, 4
          %s385 = int_to_ptr.vmem [resolvable:$true] %s384
          %387 = dma.hbm_to_vmem [thread:$0]  %s383, 128, %s385, %s372
        $region52: #{tpu_custom_call.1} parent=47 // pred_fallthru
          _
      $region48: #{tpu_custom_call.1} parent=5 // pred_fallthru
        _
      %p388 = scmp.le.s32.totalorder 1, %s24
      %p389 = scmp.lt.s32.totalorder %s24, 3
      %p390 = pnand %p388, %p389
      %p391 = pneg %p390
      // Predicated region
      $region53: #{tpu_custom_call.1} parent=5 // pred_check
        _
      $region54: #{tpu_custom_call.1} parent=5 // pred_check_branch
        %393 = sbr.rel (%p390) target = $region56
      $region55: #{tpu_custom_call.1} parent=5 // pred_region
        %s394 = ssub.s32 %s24, 1
        %s395 = sand.u32 %s51, 1
        %s396 = scalar_lea.sflag [#allocation5], %s395
        %s397 = sand.u32 %s51, 1
        %s398 = smul.addr %s397, 8
        %s399 = scalar_lea.vmem [#allocation4], %s398
        // Predicated region
        $region57: #{tpu_custom_call.1} parent=55 // pred_check
          %p400 = pneg %p64
        $region58: #{tpu_custom_call.1} parent=55 // pred_check_branch
          %402 = sbr.rel (%p400) target = $region60
        $region59: #{tpu_custom_call.1} parent=55 // pred_region
          %404 = dma.done %s396, 128
        $region60: #{tpu_custom_call.1} parent=55 // pred_fallthru
          _
        // Predicated region
        $region61: #{tpu_custom_call.1} parent=55 // pred_check
          %p405 = pneg %p90
        $region62: #{tpu_custom_call.1} parent=55 // pred_check_branch
          %407 = sbr.rel (%p405) target = $region64
        $region63: #{tpu_custom_call.1} parent=55 // pred_region
          %409 = dma.done [#allocation8], 128
        $region64: #{tpu_custom_call.1} parent=55 // pred_fallthru
          _
        // Predicated region
        $region65: #{tpu_custom_call.1} parent=55 // pred_check
          %p410 = pneg %p116
        $region66: #{tpu_custom_call.1} parent=55 // pred_check_branch
          %412 = sbr.rel (%p410) target = $region68
        $region67: #{tpu_custom_call.1} parent=55 // pred_region
          %414 = dma.done [#allocation8], 128
        $region68: #{tpu_custom_call.1} parent=55 // pred_fallthru
          _
        // Predicated region
        $region69: #{tpu_custom_call.1} parent=55 // pred_check
          %p415 = pneg %p137
        $region70: #{tpu_custom_call.1} parent=55 // pred_check_branch
          %417 = sbr.rel (%p415) target = $region72
        $region71: #{tpu_custom_call.1} parent=55 // pred_region
          %419 = dma.done [#allocation11], 512
        $region72: #{tpu_custom_call.1} parent=55 // pred_fallthru
          _
        // Predicated region
        $region73: #{tpu_custom_call.1} parent=55 // pred_check
          %p420 = pneg %p179
        $region74: #{tpu_custom_call.1} parent=55 // pred_check_branch
          %422 = sbr.rel (%p420) target = $region76
        $region75: #{tpu_custom_call.1} parent=55 // pred_region
          %424 = dma.done [#allocation11], 512
        $region76: #{tpu_custom_call.1} parent=55 // pred_fallthru
          _
        // Predicated region
        $region77: #{tpu_custom_call.1} parent=55 // pred_check
          %p425 = pneg %p221
        $region78: #{tpu_custom_call.1} parent=55 // pred_check_branch
          %427 = sbr.rel (%p425) target = $region80
        $region79: #{tpu_custom_call.1} parent=55 // pred_region
          %429 = dma.done [#allocation14], 512
        $region80: #{tpu_custom_call.1} parent=55 // pred_fallthru
          _
        %s430 = sand.u32 %s51, 1
        %s431 = scalar_lea.sflag [#allocation5], %s430
        %s432 = sand.u32 %s51, 1
        %s433 = smul.addr %s432, 8
        %s434 = scalar_lea.vmem [#allocation4], %s433
        %p435 = pneg %p64
        %p436 = pneg %p61
        %p437 = pneg %p90
        %p438 = pneg %p87
        %p439 = pneg %p116
        %p440 = pneg %p113
        %p441 = pneg %p137
        %p442 = pneg %p134
        %p443 = pneg %p158
        %p444 = pneg %p155
        %p445 = pneg %p179
        %p446 = pneg %p176
        %p447 = pneg %p200
        %p448 = pneg %p197
        %p449 = pneg %p221
        %p450 = pneg %p218
        %p451 = pneg %p242
        %p452 = pneg %p239
        %p453 = pneg %p270
        %p454 = pneg %p267
        %s455 = sand.u32 %s257, 1
        %s456 = scalar_lea.sflag [#allocation6], %s455
        %s457 = sand.u32 %s257, 1
        %s458 = smul.addr %s457, 8
        %s459 = scalar_lea.vmem [#allocation15], %s458
        %p460 = scmp.eq.s32.totalorder %s34, 0
        // Predicated region
        $region81: #{tpu_custom_call.1} parent=55 // pred_check
          %p461 = pneg %p460
        $region82: #{tpu_custom_call.1} parent=55 // pred_check_branch
          %463 = sbr.rel (%p461) target = $region84
        $region83: #{tpu_custom_call.1} parent=55 // pred_region
          %v464 = vld [vmem:[#allocation7] sm:$0xff]
          %v465 = vld [vmem:[#allocation12] sm:$0xff]
          %v466 = vld [vmem:[#allocation12 + $0x8] sm:$0xff]
          %v467 = vld [vmem:[#allocation12 + $0x10] sm:$0xff]
          %v468 = vld [vmem:[#allocation12 + $0x18] sm:$0xff]
          %v469 = vld [vmem:[%s6] sm:$0x1]
          %v471 = vperm.slane %v469, 0
          %vm473 = vcmask 261120
          %v475 = vsel %vm473, %v464, 0
          %v478 = vsel %vm473, %v465, 0
          %v481 = vsel %vm473, %v466, 0
          %v484 = vsel %vm473, %v467, 0
          %v487 = vsel %vm473, %v468, 0
          %489 = vmatpush.xpose.msra.mxu0 0.0
          %490 = vmatpush.xpose.msra.mxu0 0.0
          %491 = vmatpush.xpose.msra.mxu0 0.0
          %492 = vmatpush.xpose.msra.mxu0 0.0
          %493 = vmatpush.xpose.msra.mxu0 0.0
          %494 = vmatpush.xpose.msra.mxu0 0.0
          %495 = vmatpush.xpose.msra.mxu0 0.0
          %496 = vmatpush.xpose.msra.mxu0 0.0
          %497 = vmatpush.xpose.msra.mxu0 0.0
          %498 = vmatpush.xpose.msra.mxu0 0.0
          %499 = vmatpush.xpose.msra.mxu0 0.0
          %500 = vmatpush.xpose.msra.mxu0 0.0
          %501 = vmatpush.xpose.msra.mxu0 %v487
          %502 = vmatpush.xpose.msra.mxu0 %v484
          %503 = vmatpush.xpose.msra.mxu0 %v481
          %504 = vmatpush.xpose.msra.mxu0 %v478
          %505 = vmatmul.f32.gmra.mxu0 %v475
          %v506 = vpop.f32.mrf.mxu0
          %v507 = vadd.f32 %v471, %v506
          %508 = vdwg.mxu0
          %509 = vst.msk [vmem:[#allocation2] sm:$0xff] %vm473, %v507
          %v510 = vld [vmem:[#allocation9] sm:$0xff]
          %v511 = vld [vmem:[#allocation13] sm:$0xff]
          %v512 = vld [vmem:[#allocation13 + $0x8] sm:$0xff]
          %v513 = vld [vmem:[#allocation13 + $0x10] sm:$0xff]
          %v514 = vld [vmem:[#allocation13 + $0x18] sm:$0xff]
          %v515 = vld [vmem:[%s8] sm:$0x1]
          %v517 = vperm.slane %v515, 0
          %v520 = vsel %vm473, %v510, 0
          %v523 = vsel %vm473, %v511, 0
          %v526 = vsel %vm473, %v512, 0
          %v529 = vsel %vm473, %v513, 0
          %v532 = vsel %vm473, %v514, 0
          %534 = vmatpush.xpose.msra.mxu0 0.0
          %535 = vmatpush.xpose.msra.mxu0 0.0
          %536 = vmatpush.xpose.msra.mxu0 0.0
          %537 = vmatpush.xpose.msra.mxu0 0.0
          %538 = vmatpush.xpose.msra.mxu0 0.0
          %539 = vmatpush.xpose.msra.mxu0 0.0
          %540 = vmatpush.xpose.msra.mxu0 0.0
          %541 = vmatpush.xpose.msra.mxu0 0.0
          %542 = vmatpush.xpose.msra.mxu0 0.0
          %543 = vmatpush.xpose.msra.mxu0 0.0
          %544 = vmatpush.xpose.msra.mxu0 0.0
          %545 = vmatpush.xpose.msra.mxu0 0.0
          %546 = vmatpush.xpose.msra.mxu0 %v532
          %547 = vmatpush.xpose.msra.mxu0 %v529
          %548 = vmatpush.xpose.msra.mxu0 %v526
          %549 = vmatpush.xpose.msra.mxu0 %v523
          %550 = vmatmul.f32.gmra.mxu0 %v520
          %v551 = vpop.f32.mrf.mxu0
          %v552 = vadd.f32 %v517, %v551
          %553 = vdwg.mxu0
          %554 = vst.msk [vmem:[#allocation3] sm:$0xff] %vm473, %v552
        $region84: #{tpu_custom_call.1} parent=55 // pred_fallthru
          _
        %v555 = vld [vmem:[%s399] sm:$0xff]
        %v556 = vld [vmem:[#allocation10] sm:$0xff]
        %v557 = vld [vmem:[#allocation10 + $0x8] sm:$0xff]
        %v558 = vld [vmem:[#allocation10 + $0x10] sm:$0xff]
        %v559 = vld [vmem:[#allocation10 + $0x18] sm:$0xff]
        %v560 = vld [vmem:[%s4] sm:$0x1]
        %v562 = vperm.slane %v560, 0
        %vm564 = vcmask 261120
        %v566 = vsel %vm564, %v555, 0
        %v569 = vsel %vm564, %v556, 0
        %v572 = vsel %vm564, %v557, 0
        %v575 = vsel %vm564, %v558, 0
        %v578 = vsel %vm564, %v559, 0
        %580 = vmatpush.xpose.msra.mxu0 0.0
        %581 = vmatpush.xpose.msra.mxu0 0.0
        %582 = vmatpush.xpose.msra.mxu0 0.0
        %583 = vmatpush.xpose.msra.mxu0 0.0
        %584 = vmatpush.xpose.msra.mxu0 0.0
        %585 = vmatpush.xpose.msra.mxu0 0.0
        %586 = vmatpush.xpose.msra.mxu0 0.0
        %587 = vmatpush.xpose.msra.mxu0 0.0
        %588 = vmatpush.xpose.msra.mxu0 0.0
        %589 = vmatpush.xpose.msra.mxu0 0.0
        %590 = vmatpush.xpose.msra.mxu0 0.0
        %591 = vmatpush.xpose.msra.mxu0 0.0
        %592 = vmatpush.xpose.msra.mxu0 %v578
        %593 = vmatpush.xpose.msra.mxu0 %v575
        %594 = vmatpush.xpose.msra.mxu0 %v572
        %595 = vmatpush.xpose.msra.mxu0 %v569
        %596 = vmatmul.f32.gmra.mxu0 %v566
        %v597 = vpop.f32.mrf.mxu0
        %v598 = vadd.f32 %v562, %v597
        %599 = vdwg.mxu0
        %v600 = vmul.f32 %v598, 0.35355338
        %602 = vrot.lane.b32.xlu0 %v600, 120
        %v603 = vpop.permute.xlu0 %602
        %605 = vrot.lane.b32.xlu0 %v600, 112
        %v606 = vpop.permute.xlu0 %605
        %608 = vrot.lane.b32.xlu0 %v600, 104
        %v609 = vpop.permute.xlu0 %608
        %v611 = vrot.slane %v606, 4
        %vm612 = vcmask 1047556
        %v613 = vsel %vm612, %v611, %v600
        %v614 = vrot.slane %v600, 4
        %v615 = vsel %vm612, %v606, %v614
        %v617 = vunpack.c.l.s4 1983009808
        %v618 = vunpack.c.0.s8 %v617
        %v619 = vperm.slane %v613, %v618
        %v621 = vunpack.c.l.s4 1983009808
        %v622 = vunpack.c.0.s8 %v621
        %v623 = vperm.slane %v615, %v622
        %v624 = vrot.slane %v609, 4
        %v625 = vsel %vm612, %v624, %v603
        %v626 = vrot.slane %v603, 4
        %v627 = vsel %vm612, %v609, %v626
        %v629 = vunpack.c.l.s4 1983009808
        %v630 = vunpack.c.0.s8 %v629
        %v631 = vperm.slane %v625, %v630
        %v633 = vunpack.c.l.s4 1983009808
        %v634 = vunpack.c.0.s8 %v633
        %v635 = vperm.slane %v627, %v634
        %v636 = vrot.slane %v631, 4
        %v637 = vsel %vm612, %v636, %v619
        %v638 = vrot.slane %v619, 4
        %v639 = vsel %vm612, %v631, %v638
        %v641 = vunpack.c.l.s4 1934713408
        %v642 = vunpack.c.0.s8 %v641
        %v643 = vperm.slane %v637, %v642
        %v645 = vunpack.c.l.s4 1934713408
        %v646 = vunpack.c.0.s8 %v645
        %v647 = vperm.slane %v639, %v646
        %v648 = vrot.slane %v635, 4
        %v649 = vsel %vm612, %v648, %v623
        %v650 = vrot.slane %v623, 4
        %v651 = vsel %vm612, %v635, %v650
        %v653 = vunpack.c.l.s4 1934713408
        %v654 = vunpack.c.0.s8 %v653
        %v655 = vperm.slane %v649, %v654
        %v657 = vunpack.c.l.s4 1934713408
        %v658 = vunpack.c.0.s8 %v657
        %v659 = vperm.slane %v651, %v658
        %v660 = vrot.slane %v643, 4
        %v661 = vsel %vm612, 0.0, %v660
        %v662 = vrot.slane %v647, 4
        %v663 = vsel %vm612, 0.0, %v662
        %v664 = vrot.slane %v655, 4
        %v665 = vsel %vm612, 0.0, %v664
        %v666 = vrot.slane %v659, 4
        %v667 = vsel %vm612, 0.0, %v666
        %v668 = vsel %vm612, %v662, %v643
        %v670 = vunpack.c.l.s4 1983009808
        %v671 = vunpack.c.0.s8 %v670
        %v672 = vperm.slane %v668, %v671
        %v673 = vrot.slane %v663, 4
        %v674 = vsel %vm612, %v673, %v661
        %v676 = vunpack.c.l.s4 1983009808
        %v677 = vunpack.c.0.s8 %v676
        %v678 = vperm.slane %v674, %v677
        %v679 = vsel %vm612, %v666, %v655
        %v681 = vunpack.c.l.s4 1983009808
        %v682 = vunpack.c.0.s8 %v681
        %v683 = vperm.slane %v679, %v682
        %v684 = vrot.slane %v667, 4
        %v685 = vsel %vm612, %v684, %v665
        %v687 = vunpack.c.l.s4 1983009808
        %v688 = vunpack.c.0.s8 %v687
        %v689 = vperm.slane %v685, %v688
        %v690 = vrot.slane %v678, 4
        %v691 = vsel %vm612, %v690, %v672
        %v692 = vrot.slane %v672, 4
        %v693 = vsel %vm612, %v678, %v692
        %v695 = vunpack.c.l.s4 1934713408
        %v696 = vunpack.c.0.s8 %v695
        %v697 = vperm.slane %v691, %v696
        %v699 = vunpack.c.l.s4 1934713408
        %v700 = vunpack.c.0.s8 %v699
        %v701 = vperm.slane %v693, %v700
        %v702 = vrot.slane %v689, 4
        %v703 = vsel %vm612, %v702, %v683
        %v704 = vrot.slane %v683, 4
        %v705 = vsel %vm612, %v689, %v704
        %v707 = vunpack.c.l.s4 1934713408
        %v708 = vunpack.c.0.s8 %v707
        %v709 = vperm.slane %v703, %v708
        %v711 = vunpack.c.l.s4 1934713408
        %v712 = vunpack.c.0.s8 %v711
        %v713 = vperm.slane %v705, %v712
        %v714 = vrot.slane %v709, 4
        %v715 = vsel %vm612, %v714, %v697
        %v716 = vrot.slane %v697, 4
        %v717 = vsel %vm612, %v709, %v716
        %v718 = vrot.slane %v713, 4
        %v719 = vsel %vm612, %v718, %v701
        %v720 = vrot.slane %v701, 4
        %v721 = vsel %vm612, %v713, %v720
        %v722 = vld [vmem:[#allocation2] sm:$0xff]
        %v723 = vld [vmem:[#allocation3] sm:$0xff]
        %725 = vrot.lane.b32.xlu0 %v722, 120
        %v726 = vpop.permute.xlu0 %725
        %728 = vrot.lane.b32.xlu0 %v722, 112
        %v729 = vpop.permute.xlu0 %728
        %731 = vrot.lane.b32.xlu0 %v722, 104
        %v732 = vpop.permute.xlu0 %731
        %v734 = vrot.slane %v729, 4
        %v735 = vsel %vm612, %v734, %v722
        %v736 = vrot.slane %v722, 4
        %v737 = vsel %vm612, %v729, %v736
        %v739 = vunpack.c.l.s4 1983009808
        %v740 = vunpack.c.0.s8 %v739
        %v741 = vperm.slane %v735, %v740
        %v743 = vunpack.c.l.s4 1983009808
        %v744 = vunpack.c.0.s8 %v743
        %v745 = vperm.slane %v737, %v744
        %v746 = vrot.slane %v732, 4
        %v747 = vsel %vm612, %v746, %v726
        %v748 = vrot.slane %v726, 4
        %v749 = vsel %vm612, %v732, %v748
        %v751 = vunpack.c.l.s4 1983009808
        %v752 = vunpack.c.0.s8 %v751
        %v753 = vperm.slane %v747, %v752
        %v755 = vunpack.c.l.s4 1983009808
        %v756 = vunpack.c.0.s8 %v755
        %v757 = vperm.slane %v749, %v756
        %v758 = vrot.slane %v753, 4
        %v759 = vsel %vm612, %v758, %v741
        %v760 = vrot.slane %v741, 4
        %v761 = vsel %vm612, %v753, %v760
        %v763 = vunpack.c.l.s4 1934713408
        %v764 = vunpack.c.0.s8 %v763
        %v765 = vperm.slane %v759, %v764
        %v767 = vunpack.c.l.s4 1934713408
        %v768 = vunpack.c.0.s8 %v767
        %v769 = vperm.slane %v761, %v768
        %v770 = vrot.slane %v757, 4
        %v771 = vsel %vm612, %v770, %v745
        %v772 = vrot.slane %v745, 4
        %v773 = vsel %vm612, %v757, %v772
        %v775 = vunpack.c.l.s4 1934713408
        %v776 = vunpack.c.0.s8 %v775
        %v777 = vperm.slane %v771, %v776
        %v779 = vunpack.c.l.s4 1934713408
        %v780 = vunpack.c.0.s8 %v779
        %v781 = vperm.slane %v773, %v780
        %v782 = vrot.slane %v765, 4
        %v783 = vsel %vm612, 0.0, %v782
        %v784 = vrot.slane %v769, 4
        %v785 = vsel %vm612, 0.0, %v784
        %v786 = vrot.slane %v777, 4
        %v787 = vsel %vm612, 0.0, %v786
        %v788 = vrot.slane %v781, 4
        %v789 = vsel %vm612, 0.0, %v788
        %v790 = vsel %vm612, %v784, %v765
        %v792 = vunpack.c.l.s4 1983009808
        %v793 = vunpack.c.0.s8 %v792
        %v794 = vperm.slane %v790, %v793
        %v795 = vrot.slane %v785, 4
        %v796 = vsel %vm612, %v795, %v783
        %v798 = vunpack.c.l.s4 1983009808
        %v799 = vunpack.c.0.s8 %v798
        %v800 = vperm.slane %v796, %v799
        %v801 = vsel %vm612, %v788, %v777
        %v803 = vunpack.c.l.s4 1983009808
        %v804 = vunpack.c.0.s8 %v803
        %v805 = vperm.slane %v801, %v804
        %v806 = vrot.slane %v789, 4
        %v807 = vsel %vm612, %v806, %v787
        %v809 = vunpack.c.l.s4 1983009808
        %v810 = vunpack.c.0.s8 %v809
        %v811 = vperm.slane %v807, %v810
        %v812 = vrot.slane %v800, 4
        %v813 = vsel %vm612, %v812, %v794
        %v814 = vrot.slane %v794, 4
        %v815 = vsel %vm612, %v800, %v814
        %v817 = vunpack.c.l.s4 1934713408
        %v818 = vunpack.c.0.s8 %v817
        %v819 = vperm.slane %v813, %v818
        %v821 = vunpack.c.l.s4 1934713408
        %v822 = vunpack.c.0.s8 %v821
        %v823 = vperm.slane %v815, %v822
        %v824 = vrot.slane %v811, 4
        %v825 = vsel %vm612, %v824, %v805
        %v826 = vrot.slane %v805, 4
        %v827 = vsel %vm612, %v811, %v826
        %v829 = vunpack.c.l.s4 1934713408
        %v830 = vunpack.c.0.s8 %v829
        %v831 = vperm.slane %v825, %v830
        %v833 = vunpack.c.l.s4 1934713408
        %v834 = vunpack.c.0.s8 %v833
        %v835 = vperm.slane %v827, %v834
        %v836 = vrot.slane %v831, 4
        %v837 = vsel %vm612, %v836, %v819
        %v838 = vrot.slane %v819, 4
        %v839 = vsel %vm612, %v831, %v838
        %v840 = vrot.slane %v835, 4
        %v841 = vsel %vm612, %v840, %v823
        %v842 = vrot.slane %v823, 4
        %v843 = vsel %vm612, %v835, %v842
        %845 = vrot.lane.b32.xlu0 %v723, 120
        %v846 = vpop.permute.xlu0 %845
        %848 = vrot.lane.b32.xlu0 %v723, 112
        %v849 = vpop.permute.xlu0 %848
        %851 = vrot.lane.b32.xlu0 %v723, 104
        %v852 = vpop.permute.xlu0 %851
        %v854 = vrot.slane %v849, 4
        %v855 = vsel %vm612, %v854, %v723
        %v856 = vrot.slane %v723, 4
        %v857 = vsel %vm612, %v849, %v856
        %v859 = vunpack.c.l.s4 1983009808
        %v860 = vunpack.c.0.s8 %v859
        %v861 = vperm.slane %v855, %v860
        %v863 = vunpack.c.l.s4 1983009808
        %v864 = vunpack.c.0.s8 %v863
        %v865 = vperm.slane %v857, %v864
        %v866 = vrot.slane %v852, 4
        %v867 = vsel %vm612, %v866, %v846
        %v868 = vrot.slane %v846, 4
        %v869 = vsel %vm612, %v852, %v868
        %v871 = vunpack.c.l.s4 1983009808
        %v872 = vunpack.c.0.s8 %v871
        %v873 = vperm.slane %v867, %v872
        %v875 = vunpack.c.l.s4 1983009808
        %v876 = vunpack.c.0.s8 %v875
        %v877 = vperm.slane %v869, %v876
        %v878 = vrot.slane %v873, 4
        %v879 = vsel %vm612, %v878, %v861
        %v880 = vrot.slane %v861, 4
        %v881 = vsel %vm612, %v873, %v880
        %v883 = vunpack.c.l.s4 1934713408
        %v884 = vunpack.c.0.s8 %v883
        %v885 = vperm.slane %v879, %v884
        %v887 = vunpack.c.l.s4 1934713408
        %v888 = vunpack.c.0.s8 %v887
        %v889 = vperm.slane %v881, %v888
        %v890 = vrot.slane %v877, 4
        %v891 = vsel %vm612, %v890, %v865
        %v892 = vrot.slane %v865, 4
        %v893 = vsel %vm612, %v877, %v892
        %v895 = vunpack.c.l.s4 1934713408
        %v896 = vunpack.c.0.s8 %v895
        %v897 = vperm.slane %v891, %v896
        %v899 = vunpack.c.l.s4 1934713408
        %v900 = vunpack.c.0.s8 %v899
        %v901 = vperm.slane %v893, %v900
        %v902 = vrot.slane %v885, 4
        %v903 = vsel %vm612, 0.0, %v902
        %v904 = vrot.slane %v889, 4
        %v905 = vsel %vm612, 0.0, %v904
        %v906 = vrot.slane %v897, 4
        %v907 = vsel %vm612, 0.0, %v906
        %v908 = vrot.slane %v901, 4
        %v909 = vsel %vm612, 0.0, %v908
        %v910 = vsel %vm612, %v904, %v885
        %v912 = vunpack.c.l.s4 1983009808
        %v913 = vunpack.c.0.s8 %v912
        %v914 = vperm.slane %v910, %v913
        %v915 = vrot.slane %v905, 4
        %v916 = vsel %vm612, %v915, %v903
        %v918 = vunpack.c.l.s4 1983009808
        %v919 = vunpack.c.0.s8 %v918
        %v920 = vperm.slane %v916, %v919
        %v921 = vsel %vm612, %v908, %v897
        %v923 = vunpack.c.l.s4 1983009808
        %v924 = vunpack.c.0.s8 %v923
        %v925 = vperm.slane %v921, %v924
        %v926 = vrot.slane %v909, 4
        %v927 = vsel %vm612, %v926, %v907
        %v929 = vunpack.c.l.s4 1983009808
        %v930 = vunpack.c.0.s8 %v929
        %v931 = vperm.slane %v927, %v930
        %v932 = vrot.slane %v920, 4
        %v933 = vsel %vm612, %v932, %v914
        %v934 = vrot.slane %v914, 4
        %v935 = vsel %vm612, %v920, %v934
        %v937 = vunpack.c.l.s4 1934713408
        %v938 = vunpack.c.0.s8 %v937
        %v939 = vperm.slane %v933, %v938
        %v941 = vunpack.c.l.s4 1934713408
        %v942 = vunpack.c.0.s8 %v941
        %v943 = vperm.slane %v935, %v942
        %v944 = vrot.slane %v931, 4
        %v945 = vsel %vm612, %v944, %v925
        %v946 = vrot.slane %v925, 4
        %v947 = vsel %vm612, %v931, %v946
        %v949 = vunpack.c.l.s4 1934713408
        %v950 = vunpack.c.0.s8 %v949
        %v951 = vperm.slane %v945, %v950
        %v953 = vunpack.c.l.s4 1934713408
        %v954 = vunpack.c.0.s8 %v953
        %v955 = vperm.slane %v947, %v954
        %v956 = vrot.slane %v951, 4
        %v957 = vsel %vm612, %v956, %v939
        %v958 = vrot.slane %v939, 4
        %v959 = vsel %vm612, %v951, %v958
        %v960 = vrot.slane %v955, 4
        %v961 = vsel %vm612, %v960, %v943
        %v962 = vrot.slane %v943, 4
        %v963 = vsel %vm612, %v955, %v962
        %vm964 = vcmask 64512
        %v966 = vsel %vm964, %v715, 0
        %v969 = vsel %vm964, %v837, 0
        %971 = vmatpush.xpose.msra.mxu0 0.0
        %972 = vmatpush.xpose.msra.mxu0 0.0
        %973 = vmatpush.xpose.msra.mxu0 0.0
        %974 = vmatpush.xpose.msra.mxu0 0.0
        %975 = vmatpush.xpose.msra.mxu0 0.0
        %976 = vmatpush.xpose.msra.mxu0 0.0
        %977 = vmatpush.xpose.msra.mxu0 0.0
        %978 = vmatpush.xpose.msra.mxu0 0.0
        %979 = vmatpush.xpose.msra.mxu0 0.0
        %980 = vmatpush.xpose.msra.mxu0 0.0
        %981 = vmatpush.xpose.msra.mxu0 0.0
        %982 = vmatpush.xpose.msra.mxu0 0.0
        %983 = vmatpush.xpose.msra.mxu0 0.0
        %984 = vmatpush.xpose.msra.mxu0 0.0
        %985 = vmatpush.xpose.msra.mxu0 0.0
        %986 = vmatpush.xpose.msra.mxu0 %v969
        %987 = vmatmul.f32.gmra.mxu0 %v966
        %v988 = vpop.f32.mrf.mxu0
        %v989 = vadd.f32 0.0, %v988
        %990 = vdwg.mxu0
        %v992 = vsel %vm964, %v717, 0
        %v995 = vsel %vm964, %v839, 0
        %997 = vmatpush.xpose.msra.mxu0 0.0
        %998 = vmatpush.xpose.msra.mxu0 0.0
        %999 = vmatpush.xpose.msra.mxu0 0.0
        %1000 = vmatpush.xpose.msra.mxu0 0.0
        %1001 = vmatpush.xpose.msra.mxu0 0.0
        %1002 = vmatpush.xpose.msra.mxu0 0.0
        %1003 = vmatpush.xpose.msra.mxu0 0.0
        %1004 = vmatpush.xpose.msra.mxu0 0.0
        %1005 = vmatpush.xpose.msra.mxu0 0.0
        %1006 = vmatpush.xpose.msra.mxu0 0.0
        %1007 = vmatpush.xpose.msra.mxu0 0.0
        %1008 = vmatpush.xpose.msra.mxu0 0.0
        %1009 = vmatpush.xpose.msra.mxu0 0.0
        %1010 = vmatpush.xpose.msra.mxu0 0.0
        %1011 = vmatpush.xpose.msra.mxu0 0.0
        %1012 = vmatpush.xpose.msra.mxu0 %v995
        %1013 = vmatmul.f32.gmra.mxu0 %v992
        %v1014 = vpop.f32.mrf.mxu0
        %v1015 = vadd.f32 0.0, %v1014
        %1016 = vdwg.mxu0
        %v1018 = vsel %vm964, %v719, 0
        %v1021 = vsel %vm964, %v841, 0
        %1023 = vmatpush.xpose.msra.mxu0 0.0
        %1024 = vmatpush.xpose.msra.mxu0 0.0
        %1025 = vmatpush.xpose.msra.mxu0 0.0
        %1026 = vmatpush.xpose.msra.mxu0 0.0
        %1027 = vmatpush.xpose.msra.mxu0 0.0
        %1028 = vmatpush.xpose.msra.mxu0 0.0
        %1029 = vmatpush.xpose.msra.mxu0 0.0
        %1030 = vmatpush.xpose.msra.mxu0 0.0
        %1031 = vmatpush.xpose.msra.mxu0 0.0
        %1032 = vmatpush.xpose.msra.mxu0 0.0
        %1033 = vmatpush.xpose.msra.mxu0 0.0
        %1034 = vmatpush.xpose.msra.mxu0 0.0
        %1035 = vmatpush.xpose.msra.mxu0 0.0
        %1036 = vmatpush.xpose.msra.mxu0 0.0
        %1037 = vmatpush.xpose.msra.mxu0 0.0
        %1038 = vmatpush.xpose.msra.mxu0 %v1021
        %1039 = vmatmul.f32.gmra.mxu0 %v1018
        %v1040 = vpop.f32.mrf.mxu0
        %v1041 = vadd.f32 0.0, %v1040
        %1042 = vdwg.mxu0
        %v1044 = vsel %vm964, %v721, 0
        %v1047 = vsel %vm964, %v843, 0
        %1049 = vmatpush.xpose.msra.mxu0 0.0
        %1050 = vmatpush.xpose.msra.mxu0 0.0
        %1051 = vmatpush.xpose.msra.mxu0 0.0
        %1052 = vmatpush.xpose.msra.mxu0 0.0
        %1053 = vmatpush.xpose.msra.mxu0 0.0
        %1054 = vmatpush.xpose.msra.mxu0 0.0
        %1055 = vmatpush.xpose.msra.mxu0 0.0
        %1056 = vmatpush.xpose.msra.mxu0 0.0
        %1057 = vmatpush.xpose.msra.mxu0 0.0
        %1058 = vmatpush.xpose.msra.mxu0 0.0
        %1059 = vmatpush.xpose.msra.mxu0 0.0
        %1060 = vmatpush.xpose.msra.mxu0 0.0
        %1061 = vmatpush.xpose.msra.mxu0 0.0
        %1062 = vmatpush.xpose.msra.mxu0 0.0
        %1063 = vmatpush.xpose.msra.mxu0 0.0
        %1064 = vmatpush.xpose.msra.mxu0 %v1047
        %1065 = vmatmul.f32.gmra.mxu0 %v1044
        %v1066 = vpop.f32.mrf.mxu0
        %v1067 = vadd.f32 0.0, %v1066
        %1068 = vdwg.mxu0
        %v1069 = vsel %vm964, %v989, -inf
        %1070 = vmax.xlane.f32.xlu0 %v1069
        %v1071 = vpop.xlane.xlu0 %1070
        %v1072 = vsel %vm964, %v1015, -inf
        %1073 = vmax.xlane.f32.xlu0 %v1072
        %v1074 = vpop.xlane.xlu0 %1073
        %v1075 = vsel %vm964, %v1041, -inf
        %1076 = vmax.xlane.f32.xlu0 %v1075
        %v1077 = vpop.xlane.xlu0 %1076
        %v1078 = vsel %vm964, %v1067, -inf
        %1079 = vmax.xlane.f32.xlu0 %v1078
        %v1080 = vpop.xlane.xlu0 %1079
        %v1081 = vsub.f32 -inf, %v1071
        %v1082 = vsub.f32 -inf, %v1074
        %v1083 = vsub.f32 -inf, %v1077
        %v1084 = vsub.f32 -inf, %v1080
        %v1085 = vmul.f32 %v1081, 1.442695
        %v1086 = vpow.pop %v1085
        %v1087 = vmul.f32 %v1082, 1.442695
        %v1088 = vpow.pop %v1087
        %v1089 = vmul.f32 %v1083, 1.442695
        %v1090 = vpow.pop %v1089
        %v1091 = vmul.f32 %v1084, 1.442695
        %v1092 = vpow.pop %v1091
        %v1093 = vsub.f32 %v989, %v1071
        %v1094 = vsub.f32 %v1015, %v1074
        %v1095 = vsub.f32 %v1041, %v1077
        %v1096 = vsub.f32 %v1067, %v1080
        %v1097 = vmul.f32 %v1093, 1.442695
        %v1098 = vpow.pop %v1097
        %v1099 = vmul.f32 %v1094, 1.442695
        %v1100 = vpow.pop %v1099
        %v1101 = vmul.f32 %v1095, 1.442695
        %v1102 = vpow.pop %v1101
        %v1103 = vmul.f32 %v1096, 1.442695
        %v1104 = vpow.pop %v1103
        %v1105 = vmul.f32 %v1086, 0.0
        %v1106 = vmul.f32 %v1088, 0.0
        %v1107 = vmul.f32 %v1090, 0.0
        %v1108 = vmul.f32 %v1092, 0.0
        %v1109 = vsel %vm964, %v1098, 0.0
        %1110 = vadd.xlane.f32.xlu0 %v1109
        %v1111 = vpop.xlane.xlu0 %1110
        %v1112 = vsel %vm964, %v1100, 0.0
        %1113 = vadd.xlane.f32.xlu0 %v1112
        %v1114 = vpop.xlane.xlu0 %1113
        %v1115 = vsel %vm964, %v1102, 0.0
        %1116 = vadd.xlane.f32.xlu0 %v1115
        %v1117 = vpop.xlane.xlu0 %1116
        %v1118 = vsel %vm964, %v1104, 0.0
        %1119 = vadd.xlane.f32.xlu0 %v1118
        %v1120 = vpop.xlane.xlu0 %1119
        %v1121 = vadd.f32 %v1105, %v1111
        %v1122 = vadd.f32 %v1106, %v1114
        %v1123 = vadd.f32 %v1107, %v1117
        %v1124 = vadd.f32 %v1108, %v1120
        %v1126 = vsel %vm964, %v1098, 0
        %1128 = vmatpush.msra.mxu0 0.0
        %1129 = vmatpush.msra.mxu0 0.0
        %1130 = vmatpush.msra.mxu0 0.0
        %1131 = vmatpush.msra.mxu0 0.0
        %1132 = vmatpush.msra.mxu0 0.0
        %1133 = vmatpush.msra.mxu0 0.0
        %1134 = vmatpush.msra.mxu0 0.0
        %1135 = vmatpush.msra.mxu0 0.0
        %1136 = vmatpush.msra.mxu0 0.0
        %1137 = vmatpush.msra.mxu0 0.0
        %1138 = vmatpush.msra.mxu0 0.0
        %1139 = vmatpush.msra.mxu0 0.0
        %1140 = vmatpush.msra.mxu0 0.0
        %1141 = vmatpush.msra.mxu0 0.0
        %1142 = vmatpush.msra.mxu0 0.0
        %1143 = vmatpush.msra.mxu0 %v957
        %1144 = vmatmul.f32.gmra.mxu0 %v1126
        %v1145 = vpop.f32.mrf.mxu0
        %v1146 = vadd.f32 0.0, %v1145
        %1147 = vdwg.mxu0
        %v1149 = vsel %vm964, %v1100, 0
        %1151 = vmatpush.msra.mxu0 0.0
        %1152 = vmatpush.msra.mxu0 0.0
        %1153 = vmatpush.msra.mxu0 0.0
        %1154 = vmatpush.msra.mxu0 0.0
        %1155 = vmatpush.msra.mxu0 0.0
        %1156 = vmatpush.msra.mxu0 0.0
        %1157 = vmatpush.msra.mxu0 0.0
        %1158 = vmatpush.msra.mxu0 0.0
        %1159 = vmatpush.msra.mxu0 0.0
        %1160 = vmatpush.msra.mxu0 0.0
        %1161 = vmatpush.msra.mxu0 0.0
        %1162 = vmatpush.msra.mxu0 0.0
        %1163 = vmatpush.msra.mxu0 0.0
        %1164 = vmatpush.msra.mxu0 0.0
        %1165 = vmatpush.msra.mxu0 0.0
        %1166 = vmatpush.msra.mxu0 %v959
        %1167 = vmatmul.f32.gmra.mxu0 %v1149
        %v1168 = vpop.f32.mrf.mxu0
        %v1169 = vadd.f32 0.0, %v1168
        %1170 = vdwg.mxu0
        %v1172 = vsel %vm964, %v1102, 0
        %1174 = vmatpush.msra.mxu0 0.0
        %1175 = vmatpush.msra.mxu0 0.0
        %1176 = vmatpush.msra.mxu0 0.0
        %1177 = vmatpush.msra.mxu0 0.0
        %1178 = vmatpush.msra.mxu0 0.0
        %1179 = vmatpush.msra.mxu0 0.0
        %1180 = vmatpush.msra.mxu0 0.0
        %1181 = vmatpush.msra.mxu0 0.0
        %1182 = vmatpush.msra.mxu0 0.0
        %1183 = vmatpush.msra.mxu0 0.0
        %1184 = vmatpush.msra.mxu0 0.0
        %1185 = vmatpush.msra.mxu0 0.0
        %1186 = vmatpush.msra.mxu0 0.0
        %1187 = vmatpush.msra.mxu0 0.0
        %1188 = vmatpush.msra.mxu0 0.0
        %1189 = vmatpush.msra.mxu0 %v961
        %1190 = vmatmul.f32.gmra.mxu0 %v1172
        %v1191 = vpop.f32.mrf.mxu0
        %v1192 = vadd.f32 0.0, %v1191
        %1193 = vdwg.mxu0
        %v1195 = vsel %vm964, %v1104, 0
        %1197 = vmatpush.msra.mxu0 0.0
        %1198 = vmatpush.msra.mxu0 0.0
        %1199 = vmatpush.msra.mxu0 0.0
        %1200 = vmatpush.msra.mxu0 0.0
        %1201 = vmatpush.msra.mxu0 0.0
        %1202 = vmatpush.msra.mxu0 0.0
        %1203 = vmatpush.msra.mxu0 0.0
        %1204 = vmatpush.msra.mxu0 0.0
        %1205 = vmatpush.msra.mxu0 0.0
        %1206 = vmatpush.msra.mxu0 0.0
        %1207 = vmatpush.msra.mxu0 0.0
        %1208 = vmatpush.msra.mxu0 0.0
        %1209 = vmatpush.msra.mxu0 0.0
        %1210 = vmatpush.msra.mxu0 0.0
        %1211 = vmatpush.msra.mxu0 0.0
        %1212 = vmatpush.msra.mxu0 %v963
        %1213 = vmatmul.f32.gmra.mxu0 %v1195
        %v1214 = vpop.f32.mrf.mxu0
        %v1215 = vadd.f32 0.0, %v1214
        %1216 = vdwg.mxu0
        %v1217 = vadd.f32 %v1105, %v1146
        %v1218 = vadd.f32 %v1106, %v1169
        %v1219 = vadd.f32 %v1107, %v1192
        %v1220 = vadd.f32 %v1108, %v1215
        %v1221 = vrcp.pop %v1121
        %v1222 = vmul.f32 %v1121, %v1221
        %v1223 = vsub.f32 1.0, %v1222
        %v1224 = vmul.f32 %v1221, %v1223
        %v1225 = vadd.f32 %v1221, %v1224
        %vm1226 = vweird.f32 %v1121
        %vm1227 = vweird.f32 %v1221
        %vm1228 = vmor %vm1226, %vm1227
        %v1229 = vsel %vm1228, %v1221, %v1225
        %v1230 = vand.u32 2147483647, %v1121
        %vm1231 = vcmp.eq.f32.partialorder %v1230, 8.507059e+37
        %v1232 = vand.u32 %v1121, 2147483648
        %v1233 = vor.u32 1.1754944e-38, %v1232
        %v1234 = vsel %vm1231, %v1233, %v1229
        %v1235 = vmul.f32 %v1217, %v1234
        %v1236 = vrcp.pop %v1122
        %v1237 = vmul.f32 %v1122, %v1236
        %v1238 = vsub.f32 1.0, %v1237
        %v1239 = vmul.f32 %v1236, %v1238
        %v1240 = vadd.f32 %v1236, %v1239
        %vm1241 = vweird.f32 %v1122
        %vm1242 = vweird.f32 %v1236
        %vm1243 = vmor %vm1241, %vm1242
        %v1244 = vsel %vm1243, %v1236, %v1240
        %v1245 = vand.u32 2147483647, %v1122
        %vm1246 = vcmp.eq.f32.partialorder %v1245, 8.507059e+37
        %v1247 = vand.u32 %v1122, 2147483648
        %v1248 = vor.u32 1.1754944e-38, %v1247
        %v1249 = vsel %vm1246, %v1248, %v1244
        %v1250 = vmul.f32 %v1218, %v1249
        %v1251 = vrcp.pop %v1123
        %v1252 = vmul.f32 %v1123, %v1251
        %v1253 = vsub.f32 1.0, %v1252
        %v1254 = vmul.f32 %v1251, %v1253
        %v1255 = vadd.f32 %v1251, %v1254
        %vm1256 = vweird.f32 %v1123
        %vm1257 = vweird.f32 %v1251
        %vm1258 = vmor %vm1256, %vm1257
        %v1259 = vsel %vm1258, %v1251, %v1255
        %v1260 = vand.u32 2147483647, %v1123
        %vm1261 = vcmp.eq.f32.partialorder %v1260, 8.507059e+37
        %v1262 = vand.u32 %v1123, 2147483648
        %v1263 = vor.u32 1.1754944e-38, %v1262
        %v1264 = vsel %vm1261, %v1263, %v1259
        %v1265 = vmul.f32 %v1219, %v1264
        %v1266 = vrcp.pop %v1124
        %v1267 = vmul.f32 %v1124, %v1266
        %v1268 = vsub.f32 1.0, %v1267
        %v1269 = vmul.f32 %v1266, %v1268
        %v1270 = vadd.f32 %v1266, %v1269
        %vm1271 = vweird.f32 %v1124
        %vm1272 = vweird.f32 %v1266
        %vm1273 = vmor %vm1271, %vm1272
        %v1274 = vsel %vm1273, %v1266, %v1270
        %v1275 = vand.u32 2147483647, %v1124
        %vm1276 = vcmp.eq.f32.partialorder %v1275, 8.507059e+37
        %v1277 = vand.u32 %v1124, 2147483648
        %v1278 = vor.u32 1.1754944e-38, %v1277
        %v1279 = vsel %vm1276, %v1278, %v1274
        %v1280 = vmul.f32 %v1220, %v1279
        %v1281 = vrot.slane %v1265, 4
        %v1282 = vsel %vm612, %v1281, %v1235
        %v1283 = vrot.slane %v1235, 4
        %v1284 = vsel %vm612, %v1265, %v1283
        %v1286 = vunpack.c.l.s4 1983009808
        %v1287 = vunpack.c.0.s8 %v1286
        %v1288 = vperm.slane %v1282, %v1287
        %v1290 = vunpack.c.l.s4 1983009808
        %v1291 = vunpack.c.0.s8 %v1290
        %v1292 = vperm.slane %v1284, %v1291
        %v1293 = vrot.slane %v1280, 4
        %v1294 = vsel %vm612, %v1293, %v1250
        %v1295 = vrot.slane %v1250, 4
        %v1296 = vsel %vm612, %v1280, %v1295
        %v1298 = vunpack.c.l.s4 1983009808
        %v1299 = vunpack.c.0.s8 %v1298
        %v1300 = vperm.slane %v1294, %v1299
        %v1302 = vunpack.c.l.s4 1983009808
        %v1303 = vunpack.c.0.s8 %v1302
        %v1304 = vperm.slane %v1296, %v1303
        %v1305 = vrot.slane %v1300, 4
        %v1306 = vsel %vm612, %v1305, %v1288
        %v1307 = vrot.slane %v1288, 4
        %v1308 = vsel %vm612, %v1300, %v1307
        %v1310 = vunpack.c.l.s4 1934713408
        %v1311 = vunpack.c.0.s8 %v1310
        %v1312 = vperm.slane %v1306, %v1311
        %v1314 = vunpack.c.l.s4 1934713408
        %v1315 = vunpack.c.0.s8 %v1314
        %v1316 = vperm.slane %v1308, %v1315
        %v1317 = vrot.slane %v1304, 4
        %v1318 = vsel %vm612, %v1317, %v1292
        %v1319 = vrot.slane %v1292, 4
        %v1320 = vsel %vm612, %v1304, %v1319
        %v1322 = vunpack.c.l.s4 1934713408
        %v1323 = vunpack.c.0.s8 %v1322
        %v1324 = vperm.slane %v1318, %v1323
        %v1326 = vunpack.c.l.s4 1934713408
        %v1327 = vunpack.c.0.s8 %v1326
        %v1328 = vperm.slane %v1320, %v1327
        %v1329 = vrot.slane %v1312, 4
        %v1330 = vsel %vm612, 0.0, %v1329
        %v1331 = vrot.slane %v1316, 4
        %v1332 = vsel %vm612, 0.0, %v1331
        %v1333 = vrot.slane %v1324, 4
        %v1334 = vsel %vm612, 0.0, %v1333
        %v1335 = vrot.slane %v1328, 4
        %v1336 = vsel %vm612, 0.0, %v1335
        %v1337 = vsel %vm612, %v1331, %v1312
        %v1339 = vunpack.c.l.s4 1983009808
        %v1340 = vunpack.c.0.s8 %v1339
        %v1341 = vperm.slane %v1337, %v1340
        %v1342 = vrot.slane %v1332, 4
        %v1343 = vsel %vm612, %v1342, %v1330
        %v1345 = vunpack.c.l.s4 1983009808
        %v1346 = vunpack.c.0.s8 %v1345
        %v1347 = vperm.slane %v1343, %v1346
        %v1348 = vsel %vm612, %v1335, %v1324
        %v1350 = vunpack.c.l.s4 1983009808
        %v1351 = vunpack.c.0.s8 %v1350
        %v1352 = vperm.slane %v1348, %v1351
        %v1353 = vrot.slane %v1336, 4
        %v1354 = vsel %vm612, %v1353, %v1334
        %v1356 = vunpack.c.l.s4 1983009808
        %v1357 = vunpack.c.0.s8 %v1356
        %v1358 = vperm.slane %v1354, %v1357
        %v1359 = vrot.slane %v1347, 4
        %v1360 = vsel %vm612, %v1359, %v1341
        %v1361 = vrot.slane %v1341, 4
        %v1362 = vsel %vm612, %v1347, %v1361
        %v1364 = vunpack.c.l.s4 1934713408
        %v1365 = vunpack.c.0.s8 %v1364
        %v1366 = vperm.slane %v1360, %v1365
        %v1368 = vunpack.c.l.s4 1934713408
        %v1369 = vunpack.c.0.s8 %v1368
        %v1370 = vperm.slane %v1362, %v1369
        %v1371 = vrot.slane %v1358, 4
        %v1372 = vsel %vm612, %v1371, %v1352
        %v1373 = vrot.slane %v1352, 4
        %v1374 = vsel %vm612, %v1358, %v1373
        %v1376 = vunpack.c.l.s4 1934713408
        %v1377 = vunpack.c.0.s8 %v1376
        %v1378 = vperm.slane %v1372, %v1377
        %v1380 = vunpack.c.l.s4 1934713408
        %v1381 = vunpack.c.0.s8 %v1380
        %v1382 = vperm.slane %v1374, %v1381
        %v1383 = vrot.slane %v1378, 4
        %v1384 = vsel %vm612, %v1383, %v1366
        %v1385 = vrot.slane %v1366, 4
        %v1386 = vsel %vm612, %v1378, %v1385
        %v1387 = vrot.slane %v1382, 4
        %v1388 = vsel %vm612, %v1387, %v1370
        %v1389 = vrot.slane %v1370, 4
        %v1390 = vsel %vm612, %v1382, %v1389
        %1392 = vrot.lane.b32.xlu0 %v1386, 8
        %v1393 = vpop.permute.xlu0 %1392
        %1396 = vrot.lane.b32.xlu0 %v1388, 16
        %v1397 = vpop.permute.xlu0 %1396
        %1400 = vrot.lane.b32.xlu0 %v1390, 24
        %v1401 = vpop.permute.xlu0 %1400
        %v1403 = vsel %vm964, %v1384, %v1393
        %vm1404 = vcmask 130048
        %v1405 = vsel %vm1404, %v1403, %v1397
        %vm1406 = vcmask 195584
        %v1407 = vsel %vm1406, %v1405, %v1401
        %v1408 = vld [vmem:[#allocation12] sm:$0xff]
        %v1409 = vld [vmem:[#allocation12 + $0x8] sm:$0xff]
        %v1410 = vld [vmem:[#allocation12 + $0x10] sm:$0xff]
        %v1411 = vld [vmem:[#allocation12 + $0x18] sm:$0xff]
        %v1412 = vld [vmem:[%s6] sm:$0x1]
        %v1414 = vperm.slane %v1412, 0
        %v1417 = vsel %vm564, %v1407, 0
        %v1420 = vsel %vm564, %v1408, 0
        %v1423 = vsel %vm564, %v1409, 0
        %v1426 = vsel %vm564, %v1410, 0
        %v1429 = vsel %vm564, %v1411, 0
        %1431 = vmatpush.xpose.msra.mxu0 0.0
        %1432 = vmatpush.xpose.msra.mxu0 0.0
        %1433 = vmatpush.xpose.msra.mxu0 0.0
        %1434 = vmatpush.xpose.msra.mxu0 0.0
        %1435 = vmatpush.xpose.msra.mxu0 0.0
        %1436 = vmatpush.xpose.msra.mxu0 0.0
        %1437 = vmatpush.xpose.msra.mxu0 0.0
        %1438 = vmatpush.xpose.msra.mxu0 0.0
        %1439 = vmatpush.xpose.msra.mxu0 0.0
        %1440 = vmatpush.xpose.msra.mxu0 0.0
        %1441 = vmatpush.xpose.msra.mxu0 0.0
        %1442 = vmatpush.xpose.msra.mxu0 0.0
        %1443 = vmatpush.xpose.msra.mxu0 %v1429
        %1444 = vmatpush.xpose.msra.mxu0 %v1426
        %1445 = vmatpush.xpose.msra.mxu0 %v1423
        %1446 = vmatpush.xpose.msra.mxu0 %v1420
        %1447 = vmatmul.f32.gmra.mxu0 %v1417
        %v1448 = vpop.f32.mrf.mxu0
        %v1449 = vadd.f32 %v1414, %v1448
        %1450 = vdwg.mxu0
        %1451 = vst.msk [vmem:[%s459] sm:$0xff] %vm564, %v1449
        %s1452 = sand.u32 %s257, 1
        %s1453 = scalar_lea.sflag [#allocation6], %s1452
        %s1454 = sand.u32 %s257, 1
        %s1455 = smul.addr %s1454, 8
        %s1456 = scalar_lea.vmem [#allocation15], %s1455
        // Predicated region
        $region85: #{tpu_custom_call.1} parent=55 // pred_check
          %p1457 = pneg %p267
        $region86: #{tpu_custom_call.1} parent=55 // pred_check_branch
          %1459 = sbr.rel (%p1457) target = $region88
        $region87: #{tpu_custom_call.1} parent=55 // pred_region
          %1461 = vsyncadd %s1453, 0
          %s1462 = sadd.s32 %s34, %s33
          %s1463 = smul.addr %s1462, 8
          %s1464 = scalar_lea.hbm %s9, %s1463
          %s1466 = sshll.u32 %s1456, 4
          %s1467 = int_to_ptr.vmem [resolvable:$true] %s1466
          %s1468 = sshll.u32 %s1464, 4
          %s1469 = int_to_ptr.hbm [resolvable:$true] %s1468
          %1471 = dma.vmem_to_hbm [thread:$0]  %s1467, 128, %s1469, %s1453
        $region88: #{tpu_custom_call.1} parent=55 // pred_fallthru
          _
      $region56: #{tpu_custom_call.1} parent=5 // pred_fallthru
        _
      %p1472 = scmp.le.s32.totalorder 2, %s24
      // Predicated region
      $region89: #{tpu_custom_call.1} parent=5 // pred_check
        %p1473 = pneg %p1472
      $region90: #{tpu_custom_call.1} parent=5 // pred_check_branch
        %1475 = sbr.rel (%p1473) target = $region92
      $region91: #{tpu_custom_call.1} parent=5 // pred_region
        %s1476 = ssub.s32 %s24, 2
        // Predicated region
        $region93: #{tpu_custom_call.1} parent=91 // pred_check
          %p1477 = pneg %p273
        $region94: #{tpu_custom_call.1} parent=91 // pred_check_branch
          %1479 = sbr.rel (%p1477) target = $region96
        $region95: #{tpu_custom_call.1} parent=91 // pred_region
          %s1480 = sand.u32 %s258, 1
          %s1481 = scalar_lea.sflag [#allocation6], %s1480
          %s1482 = sand.u32 %s258, 1
          %s1483 = smul.addr %s1482, 8
          %s1484 = scalar_lea.vmem [#allocation15], %s1483
          %1486 = dma.done %s1481, 128
        $region96: #{tpu_custom_call.1} parent=91 // pred_fallthru
          _
      $region92: #{tpu_custom_call.1} parent=5 // pred_fallthru
        _
    $region6: #{tpu_custom_call.1} parent=1 // loop_footer
      %s28 = sadd.s32 1, %s24
    $region7: #{tpu_custom_call.1} parent=1 // loop_footer_branch
      %23 = sbr.rel target = $region3
    $region8: #{tpu_custom_call.1} parent=1 // loop_exit
      _
    %1487 = vsyncpa [#allocation5], 1
    %s1488 = scalar_lea.sflag [#allocation5], 1
    %1489 = vsyncpa %s1488, 1
    %1490 = vsyncpa [#allocation8], 1
    %1491 = vsyncpa [#allocation11], 1
    %1492 = vsyncpa [#allocation14], 1
    %1493 = vsyncpa [#allocation6], 1
    %s1494 = scalar_lea.sflag [#allocation6], 1
    %1495 = vsyncpa %s1494, 1

</llo_original>
